<compile_context>
chip_gen: v7x
topology: tpu7x:2x2x1
jax: 0.10.0
libtpu: 0.0.40
codegen_flags: <defaults>
</compile_context>

<pallas_src>
import functools

import jax
import jax.numpy as jnp
from jax.experimental import pallas as pl
from jax.experimental.pallas import tpu as pltpu


# ----------------------------- hardware probes --------------------------------

def _vmem_capacity_bytes():
    try:
        info = pltpu.get_tpu_info()
        return int(getattr(info, "vmem_capacity_bytes", 64 * 1024 * 1024))
    except Exception:
        return 64 * 1024 * 1024  # conservative (v7x per-TC VMEM)


def _vmem_limit_bytes():
    cap = _vmem_capacity_bytes()
    if cap <= 64 * 1024 * 1024:          # v7x-class part (64 MiB per TC)
        return min(cap // 2, 32 * 1024 * 1024)
    return min(cap * 3 // 4, 96 * 1024 * 1024)   # v5e / v6e (128 MiB)


def _vmem_budget_bytes():
    return _vmem_limit_bytes() // 2      # headroom for compiler scratch


def _num_tensorcores():
    """Heuristic TC-per-chip count (grid 'parallel' axes shard across TCs)."""
    try:
        kind = jax.devices()[0].device_kind.lower().replace(" ", "")
    except Exception:
        return 1
    if any(tag in kind for tag in ("v7", "7x", "v4", "v5p")):
        return 2
    return 1


# ----------------------------- small helpers ----------------------------------

def _round_up(x, m):
    return ((x + m - 1) // m) * m


def _pad2(x, rows, cols):
    r, c = x.shape
    return jnp.pad(x, ((0, rows - r), (0, cols - c)))


def _divisor_tiles(n_pad):
    return [t for t in (4096, 2048, 1024, 512, 256, 128)
            if t <= n_pad and n_pad % t == 0]


def _choose_xw_tile(n_pad, f_in_p, f_out_p, num_cores):
    budget = _vmem_budget_bytes()
    fitting = []
    for t in _divisor_tiles(n_pad):
        need = (2 * t * f_in_p * 2          # X row-tile, double-buffered, bf16
                + 2 * f_in_p * f_out_p * 2  # resident W
                + 2 * t * f_out_p * 2)      # output tile
        if need <= budget:
            fitting.append(t)
    if not fitting:
        return 128
    multi = [t for t in fitting if n_pad // t >= num_cores]
    return max(multi) if multi else max(fitting)


def _choose_agg_tiles(n_pad, f_out_p, out_itemsize, num_cores):
    """(xw_resident, tile_i, tile_k) for the aggregation matmul A @ XW."""
    budget = _vmem_budget_bytes()
    bias_bytes = 2 * 8 * f_out_p * 4
    xw_resident_bytes = 2 * n_pad * f_out_p * 2    # conservative: 2 buffers

    best, best_key = None, None
    for resident in (False, True):
        for ti in _divisor_tiles(n_pad):
            for tk in _divisor_tiles(n_pad):
                xw = xw_resident_bytes if resident else 2 * tk * f_out_p * 2
                need = (2 * ti * tk * 2                     # A block x2, bf16
                        + xw
                        + 2 * ti * f_out_p * out_itemsize   # output block x2
                        + ti * f_out_p * 4                  # f32 accumulator
                        + bias_bytes)
                if need > budget:
                    continue
                key = (resident,                    # prefer resident XW
                       n_pad // ti >= num_cores,    # keep all TCs busy (v7x)
                       min(tk, 256),                # contraction depth >= 256
                       ti * tk,                     # amortize per-step overhead
                       tk)
                if best_key is None or key > best_key:
                    best_key, best = key, (resident, ti, tk)
    return best if best is not None else (False, 128, 128)


# ----------------------------- Pallas kernels ---------------------------------

def _xw_kernel(x_ref, w_ref, o_ref):
    """Hoisted feature transform: XW_tile = X_tile @ W (once per layer)."""
    o_ref[...] = jnp.dot(x_ref[...], w_ref[...],
                         preferred_element_type=jnp.float32).astype(o_ref.dtype)


def _aggregate_kernel(a_ref, xw_ref, b_ref, o_ref, acc_ref, *,
                      apply_relu, tile_k, xw_resident):
    """out_tile = A[i, :] @ XW + b (+ReLU), k-tiled with f32 VMEM accumulator."""
    k = pl.program_id(1)

    @pl.when(k == 0)
    def _():
        acc_ref[...] = jnp.zeros_like(acc_ref)

    if xw_resident:
        start = pl.multiple_of(k * tile_k, tile_k)
        xw = xw_ref[pl.ds(start, tile_k), :]      # slice the resident XW
    else:
        xw = xw_ref[...]
    acc_ref[...] += jnp.dot(a_ref[...], xw, preferred_element_type=jnp.float32)

    @pl.when(k == pl.num_programs(1) - 1)
    def _():
        h = acc_ref[...] + b_ref[...]             # bias only in finalize step
        if apply_relu:
            h = jnp.maximum(h, 0.0)
        o_ref[...] = h.astype(o_ref.dtype)


def _fused_gcn3_kernel(a_ref, xw1_ref, b1_ref, w2_ref, b2_ref, w3_ref, b3_ref,
                       o_ref):
    """Small-graph path: all 3 GCN layers with A_norm resident in VMEM.

    A is read from the ref at each dot (not bound once) so Mosaic does not have
    to keep an extra N x N value live across the whole body.
    """
    # Layer 1 (XW1 precomputed outside).
    h = jnp.dot(a_ref[...], xw1_ref[...], preferred_element_type=jnp.float32)
    h = jnp.maximum(h + b1_ref[...], 0.0).astype(jnp.bfloat16)
    # Layer 2.
    h = jnp.dot(h, w2_ref[...], preferred_element_type=jnp.float32)
    h = jnp.dot(a_ref[...], h.astype(jnp.bfloat16),
                preferred_element_type=jnp.float32)
    h = jnp.maximum(h + b2_ref[...], 0.0).astype(jnp.bfloat16)
    # Layer 3.
    h = jnp.dot(h, w3_ref[...], preferred_element_type=jnp.float32)
    h = jnp.dot(a_ref[...], h.astype(jnp.bfloat16),
                preferred_element_type=jnp.float32)
    o_ref[...] = (h + b3_ref[...]).astype(o_ref.dtype)


# ----------------------------- kernel wrappers ---------------------------------

def _xw_pallas(x_p, w_p):
    """XW = X @ W (bf16 in, f32 MXU accumulate, bf16 out), row-tiled."""
    n_pad, f_in_p = x_p.shape
    f_out_p = w_p.shape[1]
    tile = _choose_xw_tile(n_pad, f_in_p, f_out_p, _num_tensorcores())
    return pl.pallas_call(
        _xw_kernel,
        out_shape=jax.ShapeDtypeStruct((n_pad, f_out_p), jnp.bfloat16),
        grid_spec=pltpu.PrefetchScalarGridSpec(
            num_scalar_prefetch=0,
            grid=(n_pad // tile,),
            in_specs=[
                pl.BlockSpec((tile, f_in_p), lambda i: (i, 0)),      # X row-tile
                pl.BlockSpec((f_in_p, f_out_p), lambda i: (0, 0)),   # W resident
            ],
            out_specs=pl.BlockSpec((tile, f_out_p), lambda i: (i, 0)),
        ),
        compiler_params=pltpu.CompilerParams(
            dimension_semantics=("parallel",),
            vmem_limit_bytes=_vmem_limit_bytes()),
        cost_estimate=pl.CostEstimate(
            flops=2 * n_pad * f_in_p * f_out_p,
            transcendentals=0,
            bytes_accessed=2 * (n_pad * f_in_p + f_in_p * f_out_p
                                + n_pad * f_out_p)),
    )(x_p, w_p)


def _aggregate(a_p, xw_p, b_p, *, apply_relu, out_dtype):
    """out = A @ XW + b (+ReLU); XW resident in VMEM when it fits."""
    n_pad = a_p.shape[0]
    f_out_p = xw_p.shape[1]
    out_itemsize = jnp.dtype(out_dtype).itemsize
    xw_resident, tile_i, tile_k = _choose_agg_tiles(
        n_pad, f_out_p, out_itemsize, _num_tensorcores())

    if xw_resident:
        xw_spec = pl.BlockSpec((n_pad, f_out_p), lambda i, k: (0, 0))
    else:
        xw_spec = pl.BlockSpec((tile_k, f_out_p), lambda i, k: (k, 0))

    grid = (n_pad // tile_i, n_pad // tile_k)
    kernel = functools.partial(_aggregate_kernel, apply_relu=apply_relu,
                               tile_k=tile_k, xw_resident=xw_resident)
    xw_reads = 1 if xw_resident else grid[0]
    return pl.pallas_call(
        kernel,
        out_shape=jax.ShapeDtypeStruct((n_pad, f_out_p), out_dtype),
        grid_spec=pltpu.PrefetchScalarGridSpec(
            num_scalar_prefetch=0,
            grid=grid,
            in_specs=[
                pl.BlockSpec((tile_i, tile_k), lambda i, k: (i, k)),   # A block
                xw_spec,                                               # XW
                pl.BlockSpec((1, f_out_p), lambda i, k: (0, 0)),       # bias
            ],
            out_specs=pl.BlockSpec((tile_i, f_out_p), lambda i, k: (i, 0)),
            scratch_shapes=[pltpu.VMEM((tile_i, f_out_p), jnp.float32)],
        ),
        compiler_params=pltpu.CompilerParams(
            dimension_semantics=("parallel", "arbitrary"),
            vmem_limit_bytes=_vmem_limit_bytes()),
        cost_estimate=pl.CostEstimate(
            flops=2 * n_pad * n_pad * f_out_p,
            transcendentals=0,
            bytes_accessed=(2 * n_pad * n_pad
                            + 2 * n_pad * f_out_p * xw_reads
                            + out_itemsize * n_pad * f_out_p)),
    )(a_p, xw_p, b_p)


def _fused_fits(n_pad, h_p, f_out_p):
    """VMEM-fit check for the fused path; inputs counted double-buffered."""
    in_bytes = (n_pad * n_pad * 2                      # A bf16
                + n_pad * h_p * 2                      # XW1 bf16
                + (h_p * h_p + h_p * f_out_p) * 2      # W2, W3 bf16
                + (2 * h_p + f_out_p) * 4)             # biases f32
    out_bytes = n_pad * f_out_p * 4
    live = 4 * n_pad * max(h_p, f_out_p) * 4           # f32 intermediates
    return 2 * (in_bytes + out_bytes) + live <= _vmem_budget_bytes()


def _fused_gcn3(a_p, xw1_p, b1, w2, b2, w3, b3):
    """Single pallas_call running all three layers with A_norm resident."""
    n_pad = a_p.shape[0]
    h_p = w2.shape[0]
    f_out_p = w3.shape[1]
    return pl.pallas_call(
        _fused_gcn3_kernel,
        out_shape=jax.ShapeDtypeStruct((n_pad, f_out_p), jnp.float32),
        grid_spec=pltpu.PrefetchScalarGridSpec(
            num_scalar_prefetch=0,
            grid=(1,),
            in_specs=[
                pl.BlockSpec((n_pad, n_pad), lambda i: (0, 0)),   # A_norm
                pl.BlockSpec((n_pad, h_p), lambda i: (0, 0)),     # XW1
                pl.BlockSpec((1, h_p), lambda i: (0, 0)),
                pl.BlockSpec((h_p, h_p), lambda i: (0, 0)),
                pl.BlockSpec((1, h_p), lambda i: (0, 0)),
                pl.BlockSpec((h_p, f_out_p), lambda i: (0, 0)),
                pl.BlockSpec((1, f_out_p), lambda i: (0, 0)),
            ],
            out_specs=pl.BlockSpec((n_pad, f_out_p), lambda i: (0, 0)),
        ),
        compiler_params=pltpu.CompilerParams(
            dimension_semantics=("arbitrary",),
            vmem_limit_bytes=_vmem_limit_bytes()),
        cost_estimate=pl.CostEstimate(
            flops=2 * (n_pad * h_p * h_p + n_pad * h_p * f_out_p
                       + 3 * n_pad * n_pad * max(h_p, f_out_p)),
            transcendentals=0,
            bytes_accessed=(2 * n_pad * n_pad + 2 * n_pad * h_p
                            + 2 * (h_p * h_p + h_p * f_out_p)
                            + 4 * n_pad * f_out_p)),
    )(a_p, xw1_p, b1, w2, b2, w3, b3)


# ------------------------------ JAX glue ---------------------------------------

def build_normalized_adjacency(edge_index, num_nodes, drop_rate=0.0, key=None):
    """dropout_edge + add_remaining_self_loops + symmetric norm (PyG gcn_norm)."""
    src, dst = edge_index[0], edge_index[1]
    w = jnp.ones(src.shape, dtype=jnp.float32)
    if drop_rate > 0.0:
        assert key is not None
        keep = jax.random.bernoulli(key, p=1.0 - drop_rate, shape=src.shape)
        w = w * keep.astype(jnp.float32)          # dropped edges get weight 0
    # A[dst, src]: aggregate messages src -> dst.
    a = jnp.zeros((num_nodes, num_nodes), dtype=jnp.float32)
    a = a.at[dst, src].add(w)
    # add_remaining_self_loops: only where no self loop survives.
    diag = jnp.diagonal(a)
    a = a + jnp.diag(jnp.where(diag == 0.0, 1.0, 0.0))
    deg = jnp.sum(a, axis=1)                      # degree at the target node
    dinv = jnp.where(deg > 0, jax.lax.rsqrt(deg), 0.0)
    return dinv[:, None] * a * dinv[None, :]      # D^-1/2 A D^-1/2


def glorot(key, shape):
    fan_in, fan_out = shape
    limit = jnp.sqrt(6.0 / (fan_in + fan_out))
    return jax.random.uniform(key, shape, jnp.float32, -limit, limit)


def init_params(key, feature_num, output_num, hidden):
    k1, k2, k3, kb1, kb2, kb3 = jax.random.split(key, 6)
    return {
        "w1": glorot(k1, (feature_num, hidden)),
        "b1": 0.1 * jax.random.normal(kb1, (1, hidden), jnp.float32),
        "w2": glorot(k2, (hidden, hidden)),
        "b2": 0.1 * jax.random.normal(kb2, (1, hidden), jnp.float32),
        "w3": glorot(k3, (hidden, output_num)),
        "b3": 0.1 * jax.random.normal(kb3, (1, output_num), jnp.float32),
    }


def _layer1_xw(x, w1, n_pad, f_in_p, h_p):
    """X @ W1, padded to (n_pad, h_p) bf16.

    When f_in would be lane-padded (e.g. 48 -> 128) the Pallas XW kernel would
    waste most of the contraction depth and an extra padded HBM roundtrip of X,
    so the tiny-K matmul is done in plain XLA instead.
    """
    f_in = x.shape[1]
    if f_in != f_in_p:
        xw = jnp.dot(x.astype(jnp.bfloat16), w1.astype(jnp.bfloat16),
                     preferred_element_type=jnp.float32)
        return _pad2(xw, n_pad, h_p).astype(jnp.bfloat16)
    x_p = _pad2(x, n_pad, f_in_p).astype(jnp.bfloat16)
    w1_p = _pad2(w1, f_in_p, h_p).astype(jnp.bfloat16)
    return _xw_pallas(x_p, w1_p)


def model_dropedge_forward(x, edge_index, params, drop_rate=0.0, key=None,
                           force_tiled=False):
    n, f_in = x.shape
    hidden = params["w1"].shape[1]
    f_out = params["w3"].shape[1]

    a_norm = build_normalized_adjacency(edge_index, n, drop_rate, key)

    # Pad everything to lane-dense (multiples of 128) shapes; padded rows/cols
    # of A, X, W, b are zero, so real outputs are unaffected.
    n_pad = _round_up(max(n, 8), 128)
    f_in_p = _round_up(f_in, 128)
    h_p = _round_up(hidden, 128)
    f_out_p = _round_up(f_out, 128)

    a_p = _pad2(a_norm, n_pad, n_pad).astype(jnp.bfloat16)
    w2 = _pad2(params["w2"], h_p, h_p).astype(jnp.bfloat16)
    w3 = _pad2(params["w3"], h_p, f_out_p).astype(jnp.bfloat16)
    b1 = _pad2(params["b1"], 1, h_p).astype(jnp.float32)
    b2 = _pad2(params["b2"], 1, h_p).astype(jnp.float32)
    b3 = _pad2(params["b3"], 1, f_out_p).astype(jnp.float32)

    xw1 = _layer1_xw(x, params["w1"], n_pad, f_in_p, h_p)

    if (not force_tiled) and _fused_fits(n_pad, h_p, f_out_p):
        out_p = _fused_gcn3(a_p, xw1, b1, w2, b2, w3, b3)
    else:
        h = _aggregate(a_p, xw1, b1, apply_relu=True, out_dtype=jnp.bfloat16)
        xw2 = _xw_pallas(h, w2)
        h = _aggregate(a_p, xw2, b2, apply_relu=True, out_dtype=jnp.bfloat16)
        xw3 = _xw_pallas(h, w3)
        out_p = _aggregate(a_p, xw3, b3, apply_relu=False, out_dtype=jnp.float32)
    return out_p[:n, :f_out]


def _reference_forward(x, edge_index, params, drop_rate=0.0, key=None):
    a = build_normalized_adjacency(edge_index, x.shape[0], drop_rate, key)
    h = jnp.maximum(a @ (x @ params["w1"]) + params["b1"], 0.0)
    h = jnp.maximum(a @ (h @ params["w2"]) + params["b2"], 0.0)
    return a @ (h @ params["w3"]) + params["b3"]


# ------------------------------- main ------------------------------------------

if __name__ == "__main__":
    key = jax.random.PRNGKey(0)
    k_x, k_src, k_dst, k_p = jax.random.split(key, 4)

    num_nodes = 200
    feature_num = 48
    hidden_layer_dimension = 128   # matches the original script
    output_num = 10
    num_edges = 800

    x = jax.random.normal(k_x, (num_nodes, feature_num), dtype=jnp.float32)
    edge_index = jnp.stack([
        jax.random.randint(k_src, (num_edges,), 0, num_nodes),
        jax.random.randint(k_dst, (num_edges,), 0, num_nodes),
    ]).astype(jnp.int32)

    params = init_params(k_p, feature_num, output_num, hidden_layer_dimension)

    fwd = jax.jit(model_dropedge_forward,
                  static_argnames=("drop_rate", "force_tiled"))

    # drop_rate=0 matches the module's default (dropout_edge keeps all edges).
    out_fused = fwd(x, edge_index, params)                       # fused path
    out_tiled = fwd(x, edge_index, params, force_tiled=True)     # tiled path
    out_fused, out_tiled = jax.block_until_ready((out_fused, out_tiled))

    assert out_fused.shape == (num_nodes, output_num)
    assert out_tiled.shape == (num_nodes, output_num)
    assert bool(jnp.all(jnp.isfinite(out_fused)))
    assert bool(jnp.all(jnp.isfinite(out_tiled)))

    ref = _reference_forward(x, edge_index, params)
    scale = float(jnp.max(jnp.abs(ref))) + 1e-6
    err_fused = float(jnp.max(jnp.abs(out_fused - ref)))
    err_tiled = float(jnp.max(jnp.abs(out_tiled - ref)))
    # bf16 MXU inputs with f32 accumulation across 3 chained layers.
    assert err_fused <= 0.05 * scale + 0.05, f"fused mismatch {err_fused} (scale {scale})"
    assert err_tiled <= 0.05 * scale + 0.05, f"tiled mismatch {err_tiled} (scale {scale})"

    print("KERNEL_OK")
</pallas_src>

<mosaic_0001>
module attributes {stable_mosaic.version = 11 : i64} {
  func.func private @main(%arg0: i32) attributes {dimension_semantics = [#tpu.dimension_semantics<core_parallel>], iteration_bounds = array<i64: 2>, tpu.core_type = #tpu.core_type<sc_scalar_subcore>, window_params = []} {
    return
  }
}

module attributes {stable_mosaic.version = 11 : i64} {
  func.func private @main(%arg0: i32) attributes {dimension_semantics = [#tpu.dimension_semantics<core_parallel>], iteration_bounds = array<i64: 2>, tpu.core_type = #tpu.core_type<sc_scalar_subcore>, window_params = []} {
    return
  }
}

module attributes {stable_mosaic.version = 11 : i64} {
  func.func @_fused_gcn3_kernel(%arg0: i32, %arg1: memref<256x256xbf16, #tpu.memory_space<vmem>>, %arg2: memref<256x128xbf16, #tpu.memory_space<vmem>>, %arg3: memref<1x128xf32, #tpu.memory_space<vmem>>, %arg4: memref<128x128xbf16, #tpu.memory_space<vmem>>, %arg5: memref<1x128xf32, #tpu.memory_space<vmem>>, %arg6: memref<128x128xbf16, #tpu.memory_space<vmem>>, %arg7: memref<1x128xf32, #tpu.memory_space<vmem>>, %arg8: memref<256x128xf32, #tpu.memory_space<vmem>>) attributes {dimension_semantics = [#tpu.dimension_semantics<arbitrary>], iteration_bounds = array<i64: 1>, scalar_prefetch = 0 : i64, scratch_operands = 0 : i64, tpu.core_type = #tpu.core_type<tc>, window_params = [{pipeline_mode = #tpu.pipeline_mode<synchronous>, transform_indices = @transform_0, window_bounds = array<i64: 256, 256>}, {pipeline_mode = #tpu.pipeline_mode<synchronous>, transform_indices = @transform_1, window_bounds = array<i64: 256, 128>}, {pipeline_mode = #tpu.pipeline_mode<synchronous>, transform_indices = @transform_2, window_bounds = array<i64: 1, 128>}, {pipeline_mode = #tpu.pipeline_mode<synchronous>, transform_indices = @transform_3, window_bounds = array<i64: 128, 128>}, {pipeline_mode = #tpu.pipeline_mode<synchronous>, transform_indices = @transform_4, window_bounds = array<i64: 1, 128>}, {pipeline_mode = #tpu.pipeline_mode<synchronous>, transform_indices = @transform_5, window_bounds = array<i64: 128, 128>}, {pipeline_mode = #tpu.pipeline_mode<synchronous>, transform_indices = @transform_6, window_bounds = array<i64: 1, 128>}, {pipeline_mode = #tpu.pipeline_mode<synchronous>, transform_indices = @transform_7, window_bounds = array<i64: 256, 128>}]} {
    %c0 = arith.constant 0 : index
    %c0_0 = arith.constant 0 : index
    %0 = vector.load %arg1[%c0, %c0_0] : memref<256x256xbf16, #tpu.memory_space<vmem>>, vector<256x256xbf16>
    %c0_1 = arith.constant 0 : index
    %c0_2 = arith.constant 0 : index
    %1 = vector.load %arg2[%c0_1, %c0_2] : memref<256x128xbf16, #tpu.memory_space<vmem>>, vector<256x128xbf16>
    %cst = arith.constant dense<0.000000e+00> : vector<256x128xf32>
    %2 = tpu.matmul %0, %1, %cst {dimension_numbers = #tpu.dot_dimension_numbers<[1], [0], [0], [1], [0, 0, 1, 1], [], []>} : vector<256x256xbf16>, vector<256x128xbf16>, vector<256x128xf32> -> vector<256x128xf32>
    %c0_3 = arith.constant 0 : index
    %c0_4 = arith.constant 0 : index
    %3 = vector.load %arg3[%c0_3, %c0_4] : memref<1x128xf32, #tpu.memory_space<vmem>>, vector<1x128xf32>
    %4 = vector.broadcast %3 : vector<1x128xf32> to vector<256x128xf32>
    %5 = arith.addf %2, %4 : vector<256x128xf32>
    %cst_5 = arith.constant 0.000000e+00 : f32
    %6 = vector.broadcast %cst_5 : f32 to vector<256x128xf32>
    %7 = arith.maximumf %5, %6 : vector<256x128xf32>
    %8 = arith.truncf %7 : vector<256x128xf32> to vector<256x128xbf16>
    %c0_6 = arith.constant 0 : index
    %c0_7 = arith.constant 0 : index
    %9 = vector.load %arg4[%c0_6, %c0_7] : memref<128x128xbf16, #tpu.memory_space<vmem>>, vector<128x128xbf16>
    %cst_8 = arith.constant dense<0.000000e+00> : vector<256x128xf32>
    %10 = tpu.matmul %8, %9, %cst_8 {dimension_numbers = #tpu.dot_dimension_numbers<[1], [0], [0], [1], [0, 0, 1, 1], [], []>} : vector<256x128xbf16>, vector<128x128xbf16>, vector<256x128xf32> -> vector<256x128xf32>
    %c0_9 = arith.constant 0 : index
    %c0_10 = arith.constant 0 : index
    %11 = vector.load %arg1[%c0_9, %c0_10] : memref<256x256xbf16, #tpu.memory_space<vmem>>, vector<256x256xbf16>
    %12 = arith.truncf %10 : vector<256x128xf32> to vector<256x128xbf16>
    %cst_11 = arith.constant dense<0.000000e+00> : vector<256x128xf32>
    %13 = tpu.matmul %11, %12, %cst_11 {dimension_numbers = #tpu.dot_dimension_numbers<[1], [0], [0], [1], [0, 0, 1, 1], [], []>} : vector<256x256xbf16>, vector<256x128xbf16>, vector<256x128xf32> -> vector<256x128xf32>
    %c0_12 = arith.constant 0 : index
    %c0_13 = arith.constant 0 : index
    %14 = vector.load %arg5[%c0_12, %c0_13] : memref<1x128xf32, #tpu.memory_space<vmem>>, vector<1x128xf32>
    %15 = vector.broadcast %14 : vector<1x128xf32> to vector<256x128xf32>
    %16 = arith.addf %13, %15 : vector<256x128xf32>
    %cst_14 = arith.constant 0.000000e+00 : f32
    %17 = vector.broadcast %cst_14 : f32 to vector<256x128xf32>
    %18 = arith.maximumf %16, %17 : vector<256x128xf32>
    %19 = arith.truncf %18 : vector<256x128xf32> to vector<256x128xbf16>
    %c0_15 = arith.constant 0 : index
    %c0_16 = arith.constant 0 : index
    %20 = vector.load %arg6[%c0_15, %c0_16] : memref<128x128xbf16, #tpu.memory_space<vmem>>, vector<128x128xbf16>
    %cst_17 = arith.constant dense<0.000000e+00> : vector<256x128xf32>
    %21 = tpu.matmul %19, %20, %cst_17 {dimension_numbers = #tpu.dot_dimension_numbers<[1], [0], [0], [1], [0, 0, 1, 1], [], []>} : vector<256x128xbf16>, vector<128x128xbf16>, vector<256x128xf32> -> vector<256x128xf32>
    %c0_18 = arith.constant 0 : index
    %c0_19 = arith.constant 0 : index
    %22 = vector.load %arg1[%c0_18, %c0_19] : memref<256x256xbf16, #tpu.memory_space<vmem>>, vector<256x256xbf16>
    %23 = arith.truncf %21 : vector<256x128xf32> to vector<256x128xbf16>
    %cst_20 = arith.constant dense<0.000000e+00> : vector<256x128xf32>
    %24 = tpu.matmul %22, %23, %cst_20 {dimension_numbers = #tpu.dot_dimension_numbers<[1], [0], [0], [1], [0, 0, 1, 1], [], []>} : vector<256x256xbf16>, vector<256x128xbf16>, vector<256x128xf32> -> vector<256x128xf32>
    %c0_21 = arith.constant 0 : index
    %c0_22 = arith.constant 0 : index
    %25 = vector.load %arg7[%c0_21, %c0_22] : memref<1x128xf32, #tpu.memory_space<vmem>>, vector<1x128xf32>
    %26 = vector.broadcast %25 : vector<1x128xf32> to vector<256x128xf32>
    %27 = arith.addf %24, %26 : vector<256x128xf32>
    %c0_23 = arith.constant 0 : index
    %c0_24 = arith.constant 0 : index
    %28 = vector.load %arg8[%c0_23, %c0_24] : memref<256x128xf32, #tpu.memory_space<vmem>>, vector<256x128xf32>
    tpu.vector_store %arg8[%c0_23, %c0_24], %27 {strides = array<i32>} : memref<256x128xf32, #tpu.memory_space<vmem>>, vector<256x128xf32>,
    return
  }
  func.func @transform_0(%arg0: i32) -> (i32, i32) {
    %c0_i32 = arith.constant 0 : i32
    %c0_i32_0 = arith.constant 0 : i32
    %c0_i32_1 = arith.constant 0 : i32
    return %c0_i32, %c0_i32_0 : i32, i32
  }
  func.func @transform_1(%arg0: i32) -> (i32, i32) {
    %c0_i32 = arith.constant 0 : i32
    %c0_i32_0 = arith.constant 0 : i32
    %c0_i32_1 = arith.constant 0 : i32
    return %c0_i32, %c0_i32_0 : i32, i32
  }
  func.func @transform_2(%arg0: i32) -> (i32, i32) {
    %c0_i32 = arith.constant 0 : i32
    %c0_i32_0 = arith.constant 0 : i32
    %c0_i32_1 = arith.constant 0 : i32
    return %c0_i32, %c0_i32_0 : i32, i32
  }
  func.func @transform_3(%arg0: i32) -> (i32, i32) {
    %c0_i32 = arith.constant 0 : i32
    %c0_i32_0 = arith.constant 0 : i32
    %c0_i32_1 = arith.constant 0 : i32
    return %c0_i32, %c0_i32_0 : i32, i32
  }
  func.func @transform_4(%arg0: i32) -> (i32, i32) {
    %c0_i32 = arith.constant 0 : i32
    %c0_i32_0 = arith.constant 0 : i32
    %c0_i32_1 = arith.constant 0 : i32
    return %c0_i32, %c0_i32_0 : i32, i32
  }
  func.func @transform_5(%arg0: i32) -> (i32, i32) {
    %c0_i32 = arith.constant 0 : i32
    %c0_i32_0 = arith.constant 0 : i32
    %c0_i32_1 = arith.constant 0 : i32
    return %c0_i32, %c0_i32_0 : i32, i32
  }
  func.func @transform_6(%arg0: i32) -> (i32, i32) {
    %c0_i32 = arith.constant 0 : i32
    %c0_i32_0 = arith.constant 0 : i32
    %c0_i32_1 = arith.constant 0 : i32
    return %c0_i32, %c0_i32_0 : i32, i32
  }
  func.func @transform_7(%arg0: i32) -> (i32, i32) {
    %c0_i32 = arith.constant 0 : i32
    %c0_i32_0 = arith.constant 0 : i32
    %c0_i32_1 = arith.constant 0 : i32
    return %c0_i32, %c0_i32_0 : i32, i32
  }
}

</mosaic_0001>

<llo_original>
// kernel: model_dropedge_forward.1
$region0: #{model_dropedge_forward.1}
  #allocation0 [shape = 'u32[]', space=smem, size = 0x4, offset = 0x4, fixed_abs, tag = 'smem constant byte address 0x4 - core index']
  #allocation1 [shape = 'u32[144,128]{1,0:T(1,128)}', space=vmem, size = 0x12000, scoped, tag = 'internal scratch']
  %s0 = inlined_call_operand.vmem [shape: bf16[256,256], index: 0, kind: input, shape index: {}]
  %s1 = inlined_call_operand.vmem [shape: bf16[256,128], index: 1, kind: input, shape index: {}]
  %s2 = inlined_call_operand.vmem [shape: f32[1,128], index: 2, kind: input, shape index: {}]
  %s3 = inlined_call_operand.vmem [shape: bf16[128,128], index: 3, kind: input, shape index: {}]
  %s4 = inlined_call_operand.vmem [shape: f32[1,128], index: 4, kind: input, shape index: {}]
  %s5 = inlined_call_operand.vmem [shape: bf16[128,128], index: 5, kind: input, shape index: {}]
  %s6 = inlined_call_operand.vmem [shape: f32[1,128], index: 6, kind: input, shape index: {}]
  %s7 = inlined_call_operand.vmem [shape: f32[256,128], index: 7, kind: output, shape index: {}]
  %s8 = sld [smem:[#allocation0]]
  $region38: #{model_dropedge_forward.1} parent=0
    _
  %s10 = ssub.s32 1, %s8
  %s11 = scalar_select 0, %s10, %s8
  // Predicated region
  $region2: #{model_dropedge_forward.1} parent=0 // pred_check
    _
  $region3: #{model_dropedge_forward.1} parent=0 // pred_check_branch
    %13 = sbr.rel (0) target = $region5
  $region4: #{model_dropedge_forward.1} parent=0 // pred_region
    _
  $region5: #{model_dropedge_forward.1} parent=0 // pred_fallthru
    _
  // Predicated region
  $region6: #{model_dropedge_forward.1} parent=0 // pred_check
    _
  $region7: #{model_dropedge_forward.1} parent=0 // pred_check_branch
    %15 = sbr.rel (0) target = $region9
  $region8: #{model_dropedge_forward.1} parent=0 // pred_region
    _
  $region9: #{model_dropedge_forward.1} parent=0 // pred_fallthru
    _
  // Predicated region
  $region10: #{model_dropedge_forward.1} parent=0 // pred_check
    _
  $region11: #{model_dropedge_forward.1} parent=0 // pred_check_branch
    %17 = sbr.rel (0) target = $region13
  $region12: #{model_dropedge_forward.1} parent=0 // pred_region
    _
  $region13: #{model_dropedge_forward.1} parent=0 // pred_fallthru
    _
  // Predicated region
  $region14: #{model_dropedge_forward.1} parent=0 // pred_check
    _
  $region15: #{model_dropedge_forward.1} parent=0 // pred_check_branch
    %19 = sbr.rel (0) target = $region17
  $region16: #{model_dropedge_forward.1} parent=0 // pred_region
    _
  $region17: #{model_dropedge_forward.1} parent=0 // pred_fallthru
    _
  // Predicated region
  $region18: #{model_dropedge_forward.1} parent=0 // pred_check
    _
  $region19: #{model_dropedge_forward.1} parent=0 // pred_check_branch
    %21 = sbr.rel (0) target = $region21
  $region20: #{model_dropedge_forward.1} parent=0 // pred_region
    _
  $region21: #{model_dropedge_forward.1} parent=0 // pred_fallthru
    _
  // Predicated region
  $region22: #{model_dropedge_forward.1} parent=0 // pred_check
    _
  $region23: #{model_dropedge_forward.1} parent=0 // pred_check_branch
    %23 = sbr.rel (0) target = $region25
  $region24: #{model_dropedge_forward.1} parent=0 // pred_region
    _
  $region25: #{model_dropedge_forward.1} parent=0 // pred_fallthru
    _
  // Predicated region
  $region26: #{model_dropedge_forward.1} parent=0 // pred_check
    _
  $region27: #{model_dropedge_forward.1} parent=0 // pred_check_branch
    %25 = sbr.rel (0) target = $region29
  $region28: #{model_dropedge_forward.1} parent=0 // pred_region
    _
  $region29: #{model_dropedge_forward.1} parent=0 // pred_fallthru
    _
  %v27 = vld [vmem:[%s0] sm:$0xff]
  %v28 = vld [vmem:[%s0 + $0x8] sm:$0xff]
  %v29 = vld [vmem:[%s0 + $0x10] sm:$0xff]
  %v30 = vld [vmem:[%s0 + $0x18] sm:$0xff]
  %v31 = vld [vmem:[%s0 + $0x20] sm:$0xff]
  %v32 = vld [vmem:[%s0 + $0x28] sm:$0xff]
  %v33 = vld [vmem:[%s0 + $0x30] sm:$0xff]
  %v34 = vld [vmem:[%s0 + $0x38] sm:$0xff]
  %v35 = vld [vmem:[%s0 + $0x40] sm:$0xff]
  %v36 = vld [vmem:[%s0 + $0x48] sm:$0xff]
  %v37 = vld [vmem:[%s0 + $0x50] sm:$0xff]
  %v38 = vld [vmem:[%s0 + $0x58] sm:$0xff]
  %v39 = vld [vmem:[%s0 + $0x60] sm:$0xff]
  %v40 = vld [vmem:[%s0 + $0x68] sm:$0xff]
  %v41 = vld [vmem:[%s0 + $0x70] sm:$0xff]
  %v42 = vld [vmem:[%s0 + $0x78] sm:$0xff]
  %v43 = vld [vmem:[%s0 + $0x80] sm:$0xff]
  %v44 = vld [vmem:[%s0 + $0x88] sm:$0xff]
  %v45 = vld [vmem:[%s0 + $0x90] sm:$0xff]
  %v46 = vld [vmem:[%s0 + $0x98] sm:$0xff]
  %v47 = vld [vmem:[%s0 + $0xa0] sm:$0xff]
  %v48 = vld [vmem:[%s0 + $0xa8] sm:$0xff]
  %v49 = vld [vmem:[%s0 + $0xb0] sm:$0xff]
  %v50 = vld [vmem:[%s0 + $0xb8] sm:$0xff]
  %v51 = vld [vmem:[%s0 + $0xc0] sm:$0xff]
  %v52 = vld [vmem:[%s0 + $0xc8] sm:$0xff]
  %v53 = vld [vmem:[%s0 + $0xd0] sm:$0xff]
  %v54 = vld [vmem:[%s0 + $0xd8] sm:$0xff]
  %v55 = vld [vmem:[%s0 + $0xe0] sm:$0xff]
  %v56 = vld [vmem:[%s0 + $0xe8] sm:$0xff]
  %v57 = vld [vmem:[%s0 + $0xf0] sm:$0xff]
  %v58 = vld [vmem:[%s0 + $0xf8] sm:$0xff]
  %v59 = vld [vmem:[%s1] sm:$0xf]
  %v60 = vld [vmem:[%s1 + $0x4] sm:$0xf]
  %v61 = vld [vmem:[%s1 + $0x8] sm:$0xf]
  %v62 = vld [vmem:[%s1 + $0xc] sm:$0xf]
  %v63 = vld [vmem:[%s1 + $0x10] sm:$0xf]
  %v64 = vld [vmem:[%s1 + $0x14] sm:$0xf]
  %v65 = vld [vmem:[%s1 + $0x18] sm:$0xf]
  %v66 = vld [vmem:[%s1 + $0x1c] sm:$0xf]
  %v67 = vld [vmem:[%s1 + $0x20] sm:$0xf]
  %v68 = vld [vmem:[%s1 + $0x24] sm:$0xf]
  %v69 = vld [vmem:[%s1 + $0x28] sm:$0xf]
  %v70 = vld [vmem:[%s1 + $0x2c] sm:$0xf]
  %v71 = vld [vmem:[%s1 + $0x30] sm:$0xf]
  %v72 = vld [vmem:[%s1 + $0x34] sm:$0xf]
  %v73 = vld [vmem:[%s1 + $0x38] sm:$0xf]
  %v74 = vld [vmem:[%s1 + $0x3c] sm:$0xf]
  %v75 = vld [vmem:[%s1 + $0x40] sm:$0xf]
  %v76 = vld [vmem:[%s1 + $0x44] sm:$0xf]
  %v77 = vld [vmem:[%s1 + $0x48] sm:$0xf]
  %v78 = vld [vmem:[%s1 + $0x4c] sm:$0xf]
  %v79 = vld [vmem:[%s1 + $0x50] sm:$0xf]
  %v80 = vld [vmem:[%s1 + $0x54] sm:$0xf]
  %v81 = vld [vmem:[%s1 + $0x58] sm:$0xf]
  %v82 = vld [vmem:[%s1 + $0x5c] sm:$0xf]
  %v83 = vld [vmem:[%s1 + $0x60] sm:$0xf]
  %v84 = vld [vmem:[%s1 + $0x64] sm:$0xf]
  %v85 = vld [vmem:[%s1 + $0x68] sm:$0xf]
  %v86 = vld [vmem:[%s1 + $0x6c] sm:$0xf]
  %v87 = vld [vmem:[%s1 + $0x70] sm:$0xf]
  %v88 = vld [vmem:[%s1 + $0x74] sm:$0xf]
  %v89 = vld [vmem:[%s1 + $0x78] sm:$0xf]
  %v90 = vld [vmem:[%s1 + $0x7c] sm:$0xf]
  %v91 = vld [vmem:[%s2] sm:$0x1]
  %v93 = vlaneseq
  %v94 = vshrl.u32 %v93, 7
  %v95 = vsub.s32 0, %v94
  %v96 = vrot.slane %v91, %v95
  %v130 = vunpack.c.l.b16 %v27
  %v131 = vunpack.c.h.b16 %v27
  %v132 = vunpack.c.l.b16 %v28
  %v133 = vunpack.c.h.b16 %v28
  %v134 = vunpack.c.l.b16 %v29
  %v135 = vunpack.c.h.b16 %v29
  %v136 = vunpack.c.l.b16 %v30
  %v137 = vunpack.c.h.b16 %v30
  %v138 = vunpack.c.l.b16 %v31
  %v139 = vunpack.c.h.b16 %v31
  %v140 = vunpack.c.l.b16 %v32
  %v141 = vunpack.c.h.b16 %v32
  %v142 = vunpack.c.l.b16 %v33
  %v143 = vunpack.c.h.b16 %v33
  %v144 = vunpack.c.l.b16 %v34
  %v145 = vunpack.c.h.b16 %v34
  %v146 = vunpack.c.l.b16 %v35
  %v147 = vunpack.c.h.b16 %v35
  %v148 = vunpack.c.l.b16 %v36
  %v149 = vunpack.c.h.b16 %v36
  %v150 = vunpack.c.l.b16 %v37
  %v151 = vunpack.c.h.b16 %v37
  %v152 = vunpack.c.l.b16 %v38
  %v153 = vunpack.c.h.b16 %v38
  %v154 = vunpack.c.l.b16 %v39
  %v155 = vunpack.c.h.b16 %v39
  %v156 = vunpack.c.l.b16 %v40
  %v157 = vunpack.c.h.b16 %v40
  %v158 = vunpack.c.l.b16 %v41
  %v159 = vunpack.c.h.b16 %v41
  %v160 = vunpack.c.l.b16 %v42
  %v161 = vunpack.c.h.b16 %v42
  %v162 = vunpack.c.l.b16 %v43
  %v163 = vunpack.c.h.b16 %v43
  %v164 = vunpack.c.l.b16 %v44
  %v165 = vunpack.c.h.b16 %v44
  %v166 = vunpack.c.l.b16 %v45
  %v167 = vunpack.c.h.b16 %v45
  %v168 = vunpack.c.l.b16 %v46
  %v169 = vunpack.c.h.b16 %v46
  %v170 = vunpack.c.l.b16 %v47
  %v171 = vunpack.c.h.b16 %v47
  %v172 = vunpack.c.l.b16 %v48
  %v173 = vunpack.c.h.b16 %v48
  %v174 = vunpack.c.l.b16 %v49
  %v175 = vunpack.c.h.b16 %v49
  %v176 = vunpack.c.l.b16 %v50
  %v177 = vunpack.c.h.b16 %v50
  %v178 = vunpack.c.l.b16 %v51
  %v179 = vunpack.c.h.b16 %v51
  %v180 = vunpack.c.l.b16 %v52
  %v181 = vunpack.c.h.b16 %v52
  %v182 = vunpack.c.l.b16 %v53
  %v183 = vunpack.c.h.b16 %v53
  %v184 = vunpack.c.l.b16 %v54
  %v185 = vunpack.c.h.b16 %v54
  %v186 = vunpack.c.l.b16 %v55
  %v187 = vunpack.c.h.b16 %v55
  %v188 = vunpack.c.l.b16 %v56
  %v189 = vunpack.c.h.b16 %v56
  %v190 = vunpack.c.l.b16 %v57
  %v191 = vunpack.c.h.b16 %v57
  %v192 = vunpack.c.l.b16 %v58
  %v193 = vunpack.c.h.b16 %v58
  %v194 = vpack.c.b16 %v132, %v130
  %v195 = vpack.c.b16 %v133, %v131
  %v196 = vpack.c.b16 %v136, %v134
  %v197 = vpack.c.b16 %v137, %v135
  %v198 = vpack.c.b16 %v140, %v138
  %v199 = vpack.c.b16 %v141, %v139
  %v200 = vpack.c.b16 %v144, %v142
  %v201 = vpack.c.b16 %v145, %v143
  %v202 = vpack.c.b16 %v148, %v146
  %v203 = vpack.c.b16 %v149, %v147
  %v204 = vpack.c.b16 %v152, %v150
  %v205 = vpack.c.b16 %v153, %v151
  %v206 = vpack.c.b16 %v156, %v154
  %v207 = vpack.c.b16 %v157, %v155
  %v208 = vpack.c.b16 %v160, %v158
  %v209 = vpack.c.b16 %v161, %v159
  %v210 = vpack.c.b16 %v164, %v162
  %v211 = vpack.c.b16 %v165, %v163
  %v212 = vpack.c.b16 %v168, %v166
  %v213 = vpack.c.b16 %v169, %v167
  %v214 = vpack.c.b16 %v172, %v170
  %v215 = vpack.c.b16 %v173, %v171
  %v216 = vpack.c.b16 %v176, %v174
  %v217 = vpack.c.b16 %v177, %v175
  %v218 = vpack.c.b16 %v180, %v178
  %v219 = vpack.c.b16 %v181, %v179
  %v220 = vpack.c.b16 %v184, %v182
  %v221 = vpack.c.b16 %v185, %v183
  %v222 = vpack.c.b16 %v188, %v186
  %v223 = vpack.c.b16 %v189, %v187
  %v224 = vpack.c.b16 %v192, %v190
  %v225 = vpack.c.b16 %v193, %v191
  %v290 = vunpack.c.l.b16 %v59
  %v291 = vunpack.c.l.b16 %v60
  %v292 = vunpack.c.l.b16 %v61
  %v293 = vunpack.c.l.b16 %v62
  %v294 = vunpack.c.l.b16 %v63
  %v295 = vunpack.c.l.b16 %v64
  %v296 = vunpack.c.l.b16 %v65
  %v297 = vunpack.c.l.b16 %v66
  %v298 = vunpack.c.l.b16 %v67
  %v299 = vunpack.c.l.b16 %v68
  %v300 = vunpack.c.l.b16 %v69
  %v301 = vunpack.c.l.b16 %v70
  %v302 = vunpack.c.l.b16 %v71
  %v303 = vunpack.c.l.b16 %v72
  %v304 = vunpack.c.l.b16 %v73
  %v305 = vunpack.c.l.b16 %v74
  %v306 = vunpack.c.l.b16 %v75
  %v307 = vunpack.c.l.b16 %v76
  %v308 = vunpack.c.l.b16 %v77
  %v309 = vunpack.c.l.b16 %v78
  %v310 = vunpack.c.l.b16 %v79
  %v311 = vunpack.c.l.b16 %v80
  %v312 = vunpack.c.l.b16 %v81
  %v313 = vunpack.c.l.b16 %v82
  %v314 = vunpack.c.l.b16 %v83
  %v315 = vunpack.c.l.b16 %v84
  %v316 = vunpack.c.l.b16 %v85
  %v317 = vunpack.c.l.b16 %v86
  %v318 = vunpack.c.l.b16 %v87
  %v319 = vunpack.c.l.b16 %v88
  %v320 = vunpack.c.l.b16 %v89
  %v321 = vunpack.c.l.b16 %v90
  %v322 = vpack.c.b16 %v291, %v290
  %v323 = vpack.c.b16 %v293, %v292
  %v324 = vpack.c.b16 %v295, %v294
  %v325 = vpack.c.b16 %v297, %v296
  %v326 = vpack.c.b16 %v299, %v298
  %v327 = vpack.c.b16 %v301, %v300
  %v328 = vpack.c.b16 %v303, %v302
  %v329 = vpack.c.b16 %v305, %v304
  %v330 = vpack.c.b16 %v307, %v306
  %v331 = vpack.c.b16 %v309, %v308
  %v332 = vpack.c.b16 %v311, %v310
  %v333 = vpack.c.b16 %v313, %v312
  %v334 = vpack.c.b16 %v315, %v314
  %v335 = vpack.c.b16 %v317, %v316
  %v336 = vpack.c.b16 %v319, %v318
  %v337 = vpack.c.b16 %v321, %v320
  %354 = vmatprep.subr.bf16.mxu0 0
  %355 = vmatpush1.bf16.msra.mxu0 %v322
  %356 = vmatprep.subr.bf16.mxu0 0
  %357 = vmatpush1.bf16.msra.mxu0 %v323
  %358 = vmatprep.subr.bf16.mxu0 0
  %359 = vmatpush1.bf16.msra.mxu0 %v324
  %360 = vmatprep.subr.bf16.mxu0 0
  %361 = vmatpush1.bf16.msra.mxu0 %v325
  %362 = vmatprep.subr.bf16.mxu0 0
  %363 = vmatpush1.bf16.msra.mxu0 %v326
  %364 = vmatprep.subr.bf16.mxu0 0
  %365 = vmatpush1.bf16.msra.mxu0 %v327
  %366 = vmatprep.subr.bf16.mxu0 0
  %367 = vmatpush1.bf16.msra.mxu0 %v328
  %368 = vmatprep.subr.bf16.mxu0 0
  %369 = vmatpush1.bf16.msra.mxu0 %v329
  %370 = vmatprep.subr.bf16.mxu0 0
  %371 = vmatpush1.bf16.msra.mxu0 %v330
  %372 = vmatprep.subr.bf16.mxu0 0
  %373 = vmatpush1.bf16.msra.mxu0 %v331
  %374 = vmatprep.subr.bf16.mxu0 0
  %375 = vmatpush1.bf16.msra.mxu0 %v332
  %376 = vmatprep.subr.bf16.mxu0 0
  %377 = vmatpush1.bf16.msra.mxu0 %v333
  %378 = vmatprep.subr.bf16.mxu0 0
  %379 = vmatpush1.bf16.msra.mxu0 %v334
  %380 = vmatprep.subr.bf16.mxu0 0
  %381 = vmatpush1.bf16.msra.mxu0 %v335
  %382 = vmatprep.subr.bf16.mxu0 0
  %383 = vmatpush1.bf16.msra.mxu0 %v336
  %384 = vmatprep.subr.bf16.mxu0 0
  %385 = vmatpush1.bf16.msra.mxu0 %v337
  %386 = vmatprep.mubr.bf16.mxu0 %v195
  %387 = vmatmul.mubr.bf16.gmra.mrb[0].mxu0 %v194
  %v388 = vpop.f32.mrb[0].mxu0
  %v389 = vadd.f32 %v96, %v388
  %v390 = vpop.f32.mrb[0].mxu0
  %v391 = vpop.f32.mrb[0].mxu0
  %v392 = vadd.f32 %v96, %v391
  %v393 = vpop.f32.mrb[0].mxu0
  %394 = vmatprep.mubr.bf16.mxu0 %v197
  %395 = vmatmul.mubr.bf16.gmra.mrb[0].mxu0 %v196
  %v396 = vpop.f32.mrb[0].mxu0
  %v397 = vadd.f32 %v96, %v396
  %v398 = vpop.f32.mrb[0].mxu0
  %v399 = vpop.f32.mrb[0].mxu0
  %v400 = vadd.f32 %v96, %v399
  %v401 = vpop.f32.mrb[0].mxu0
  %402 = vmatprep.mubr.bf16.mxu0 %v199
  %403 = vmatmul.mubr.bf16.gmra.mrb[0].mxu0 %v198
  %v404 = vpop.f32.mrb[0].mxu0
  %v405 = vadd.f32 %v96, %v404
  %v406 = vpop.f32.mrb[0].mxu0
  %v407 = vpop.f32.mrb[0].mxu0
  %v408 = vadd.f32 %v96, %v407
  %v409 = vpop.f32.mrb[0].mxu0
  %410 = vmatprep.mubr.bf16.mxu0 %v201
  %411 = vmatmul.mubr.bf16.gmra.mrb[0].mxu0 %v200
  %v412 = vpop.f32.mrb[0].mxu0
  %v413 = vadd.f32 %v96, %v412
  %v414 = vpop.f32.mrb[0].mxu0
  %v415 = vpop.f32.mrb[0].mxu0
  %v416 = vadd.f32 %v96, %v415
  %v417 = vpop.f32.mrb[0].mxu0
  %418 = vmatprep.mubr.bf16.mxu0 %v203
  %419 = vmatmul.mubr.bf16.gmra.mrb[0].mxu0 %v202
  %v420 = vpop.f32.mrb[0].mxu0
  %v421 = vadd.f32 %v96, %v420
  %v422 = vpop.f32.mrb[0].mxu0
  %v423 = vpop.f32.mrb[0].mxu0
  %v424 = vadd.f32 %v96, %v423
  %v425 = vpop.f32.mrb[0].mxu0
  %426 = vmatprep.mubr.bf16.mxu0 %v205
  %427 = vmatmul.mubr.bf16.gmra.mrb[0].mxu0 %v204
  %v428 = vpop.f32.mrb[0].mxu0
  %v429 = vadd.f32 %v96, %v428
  %v430 = vpop.f32.mrb[0].mxu0
  %v431 = vpop.f32.mrb[0].mxu0
  %v432 = vadd.f32 %v96, %v431
  %v433 = vpop.f32.mrb[0].mxu0
  %434 = vmatprep.mubr.bf16.mxu0 %v207
  %435 = vmatmul.mubr.bf16.gmra.mrb[0].mxu0 %v206
  %v436 = vpop.f32.mrb[0].mxu0
  %v437 = vadd.f32 %v96, %v436
  %v438 = vpop.f32.mrb[0].mxu0
  %v439 = vpop.f32.mrb[0].mxu0
  %v440 = vadd.f32 %v96, %v439
  %v441 = vpop.f32.mrb[0].mxu0
  %442 = vmatprep.mubr.bf16.mxu0 %v209
  %443 = vmatmul.mubr.bf16.gmra.mrb[0].mxu0 %v208
  %v444 = vpop.f32.mrb[0].mxu0
  %v445 = vadd.f32 %v96, %v444
  %v446 = vpop.f32.mrb[0].mxu0
  %v447 = vpop.f32.mrb[0].mxu0
  %v448 = vadd.f32 %v96, %v447
  %v449 = vpop.f32.mrb[0].mxu0
  %450 = vmatprep.mubr.bf16.mxu0 %v211
  %451 = vmatmul.mubr.bf16.gmra.mrb[0].mxu0 %v210
  %v452 = vpop.f32.mrb[0].mxu0
  %v453 = vadd.f32 %v96, %v452
  %v454 = vpop.f32.mrb[0].mxu0
  %v455 = vpop.f32.mrb[0].mxu0
  %v456 = vadd.f32 %v96, %v455
  %v457 = vpop.f32.mrb[0].mxu0
  %458 = vmatprep.mubr.bf16.mxu0 %v213
  %459 = vmatmul.mubr.bf16.gmra.mrb[0].mxu0 %v212
  %v460 = vpop.f32.mrb[0].mxu0
  %v461 = vadd.f32 %v96, %v460
  %v462 = vpop.f32.mrb[0].mxu0
  %v463 = vpop.f32.mrb[0].mxu0
  %v464 = vadd.f32 %v96, %v463
  %v465 = vpop.f32.mrb[0].mxu0
  %466 = vmatprep.mubr.bf16.mxu0 %v215
  %467 = vmatmul.mubr.bf16.gmra.mrb[0].mxu0 %v214
  %v468 = vpop.f32.mrb[0].mxu0
  %v469 = vadd.f32 %v96, %v468
  %v470 = vpop.f32.mrb[0].mxu0
  %v471 = vpop.f32.mrb[0].mxu0
  %v472 = vadd.f32 %v96, %v471
  %v473 = vpop.f32.mrb[0].mxu0
  %474 = vmatprep.mubr.bf16.mxu0 %v217
  %475 = vmatmul.mubr.bf16.gmra.mrb[0].mxu0 %v216
  %v476 = vpop.f32.mrb[0].mxu0
  %v477 = vadd.f32 %v96, %v476
  %v478 = vpop.f32.mrb[0].mxu0
  %v479 = vpop.f32.mrb[0].mxu0
  %v480 = vadd.f32 %v96, %v479
  %v481 = vpop.f32.mrb[0].mxu0
  %482 = vmatprep.mubr.bf16.mxu0 %v219
  %483 = vmatmul.mubr.bf16.gmra.mrb[0].mxu0 %v218
  %v484 = vpop.f32.mrb[0].mxu0
  %v485 = vadd.f32 %v96, %v484
  %v486 = vpop.f32.mrb[0].mxu0
  %v487 = vpop.f32.mrb[0].mxu0
  %v488 = vadd.f32 %v96, %v487
  %v489 = vpop.f32.mrb[0].mxu0
  %490 = vmatprep.mubr.bf16.mxu0 %v221
  %491 = vmatmul.mubr.bf16.gmra.mrb[0].mxu0 %v220
  %v492 = vpop.f32.mrb[0].mxu0
  %v493 = vadd.f32 %v96, %v492
  %v494 = vpop.f32.mrb[0].mxu0
  %v495 = vpop.f32.mrb[0].mxu0
  %v496 = vadd.f32 %v96, %v495
  %v497 = vpop.f32.mrb[0].mxu0
  %498 = vmatprep.mubr.bf16.mxu0 %v223
  %499 = vmatmul.mubr.bf16.gmra.mrb[0].mxu0 %v222
  %v500 = vpop.f32.mrb[0].mxu0
  %v501 = vadd.f32 %v96, %v500
  %v502 = vpop.f32.mrb[0].mxu0
  %v503 = vpop.f32.mrb[0].mxu0
  %v504 = vadd.f32 %v96, %v503
  %v505 = vpop.f32.mrb[0].mxu0
  %506 = vmatprep.mubr.bf16.mxu0 %v225
  %507 = vmatmul.mubr.bf16.gmra.mrb[0].mxu0 %v224
  %v508 = vpop.f32.mrb[0].mxu0
  %v509 = vadd.f32 %v96, %v508
  %v510 = vpop.f32.mrb[0].mxu0
  %v511 = vpop.f32.mrb[0].mxu0
  %v512 = vadd.f32 %v96, %v511
  %v513 = vpop.f32.mrb[0].mxu0
  %514 = vdwg.mxu0
  %v515 = vmax.f32 %v389, 0.0
  %v516 = vmax.f32 %v392, 0.0
  %v517 = vmax.f32 %v397, 0.0
  %v518 = vmax.f32 %v400, 0.0
  %v519 = vmax.f32 %v405, 0.0
  %v520 = vmax.f32 %v408, 0.0
  %v521 = vmax.f32 %v413, 0.0
  %v522 = vmax.f32 %v416, 0.0
  %v523 = vmax.f32 %v421, 0.0
  %v524 = vmax.f32 %v424, 0.0
  %v525 = vmax.f32 %v429, 0.0
  %v526 = vmax.f32 %v432, 0.0
  %v527 = vmax.f32 %v437, 0.0
  %v528 = vmax.f32 %v440, 0.0
  %v529 = vmax.f32 %v445, 0.0
  %v530 = vmax.f32 %v448, 0.0
  %v531 = vmax.f32 %v453, 0.0
  %v532 = vmax.f32 %v456, 0.0
  %v533 = vmax.f32 %v461, 0.0
  %v534 = vmax.f32 %v464, 0.0
  %v535 = vmax.f32 %v469, 0.0
  %v536 = vmax.f32 %v472, 0.0
  %v537 = vmax.f32 %v477, 0.0
  %v538 = vmax.f32 %v480, 0.0
  %v539 = vmax.f32 %v485, 0.0
  %v540 = vmax.f32 %v488, 0.0
  %v541 = vmax.f32 %v493, 0.0
  %v542 = vmax.f32 %v496, 0.0
  %v543 = vmax.f32 %v501, 0.0
  %v544 = vmax.f32 %v504, 0.0
  %v545 = vmax.f32 %v509, 0.0
  %v546 = vmax.f32 %v512, 0.0
  %v547 = vpack.c.bf16 %v516, %v515
  %v548 = vpack.c.bf16 %v518, %v517
  %v549 = vpack.c.bf16 %v520, %v519
  %v550 = vpack.c.bf16 %v522, %v521
  %v551 = vpack.c.bf16 %v524, %v523
  %v552 = vpack.c.bf16 %v526, %v525
  %v553 = vpack.c.bf16 %v528, %v527
  %v554 = vpack.c.bf16 %v530, %v529
  %v555 = vpack.c.bf16 %v532, %v531
  %v556 = vpack.c.bf16 %v534, %v533
  %v557 = vpack.c.bf16 %v536, %v535
  %v558 = vpack.c.bf16 %v538, %v537
  %v559 = vpack.c.bf16 %v540, %v539
  %v560 = vpack.c.bf16 %v542, %v541
  %v561 = vpack.c.bf16 %v544, %v543
  %v562 = vpack.c.bf16 %v546, %v545
  %v563 = vld [vmem:[%s3] sm:$0xf]
  %v564 = vld [vmem:[%s3 + $0x4] sm:$0xf]
  %v565 = vld [vmem:[%s3 + $0x8] sm:$0xf]
  %v566 = vld [vmem:[%s3 + $0xc] sm:$0xf]
  %v567 = vld [vmem:[%s3 + $0x10] sm:$0xf]
  %v568 = vld [vmem:[%s3 + $0x14] sm:$0xf]
  %v569 = vld [vmem:[%s3 + $0x18] sm:$0xf]
  %v570 = vld [vmem:[%s3 + $0x1c] sm:$0xf]
  %v571 = vld [vmem:[%s3 + $0x20] sm:$0xf]
  %v572 = vld [vmem:[%s3 + $0x24] sm:$0xf]
  %v573 = vld [vmem:[%s3 + $0x28] sm:$0xf]
  %v574 = vld [vmem:[%s3 + $0x2c] sm:$0xf]
  %v575 = vld [vmem:[%s3 + $0x30] sm:$0xf]
  %v576 = vld [vmem:[%s3 + $0x34] sm:$0xf]
  %v577 = vld [vmem:[%s3 + $0x38] sm:$0xf]
  %v578 = vld [vmem:[%s3 + $0x3c] sm:$0xf]
  %v595 = vunpack.c.l.b16 %v563
  %v596 = vunpack.c.l.b16 %v564
  %v597 = vunpack.c.l.b16 %v565
  %v598 = vunpack.c.l.b16 %v566
  %v599 = vunpack.c.l.b16 %v567
  %v600 = vunpack.c.l.b16 %v568
  %v601 = vunpack.c.l.b16 %v569
  %v602 = vunpack.c.l.b16 %v570
  %v603 = vunpack.c.l.b16 %v571
  %v604 = vunpack.c.l.b16 %v572
  %v605 = vunpack.c.l.b16 %v573
  %v606 = vunpack.c.l.b16 %v574
  %v607 = vunpack.c.l.b16 %v575
  %v608 = vunpack.c.l.b16 %v576
  %v609 = vunpack.c.l.b16 %v577
  %v610 = vunpack.c.l.b16 %v578
  %v611 = vpack.c.b16 %v596, %v595
  %v612 = vpack.c.b16 %v598, %v597
  %v613 = vpack.c.b16 %v600, %v599
  %v614 = vpack.c.b16 %v602, %v601
  %v615 = vpack.c.b16 %v604, %v603
  %v616 = vpack.c.b16 %v606, %v605
  %v617 = vpack.c.b16 %v608, %v607
  %v618 = vpack.c.b16 %v610, %v609
  %627 = vmatprep.subr.bf16.mxu0 0
  %628 = vmatpush1.bf16.msra.mxu0 %v611
  %629 = vmatprep.subr.bf16.mxu0 0
  %630 = vmatpush1.bf16.msra.mxu0 %v612
  %631 = vmatprep.subr.bf16.mxu0 0
  %632 = vmatpush1.bf16.msra.mxu0 %v613
  %633 = vmatprep.subr.bf16.mxu0 0
  %634 = vmatpush1.bf16.msra.mxu0 %v614
  %635 = vmatprep.subr.bf16.mxu0 0
  %636 = vmatpush1.bf16.msra.mxu0 %v615
  %637 = vmatprep.subr.bf16.mxu0 0
  %638 = vmatpush1.bf16.msra.mxu0 %v616
  %639 = vmatprep.subr.bf16.mxu0 0
  %640 = vmatpush1.bf16.msra.mxu0 %v617
  %641 = vmatprep.subr.bf16.mxu0 0
  %642 = vmatpush1.bf16.msra.mxu0 %v618
  %643 = vmatprep.subr.bf16.mxu0 0
  %644 = vmatpush1.bf16.msra.mxu0 0
  %645 = vmatprep.subr.bf16.mxu0 0
  %646 = vmatpush1.bf16.msra.mxu0 0
  %647 = vmatprep.subr.bf16.mxu0 0
  %648 = vmatpush1.bf16.msra.mxu0 0
  %649 = vmatprep.subr.bf16.mxu0 0
  %650 = vmatpush1.bf16.msra.mxu0 0
  %651 = vmatprep.subr.bf16.mxu0 0
  %652 = vmatpush1.bf16.msra.mxu0 0
  %653 = vmatprep.subr.bf16.mxu0 0
  %654 = vmatpush1.bf16.msra.mxu0 0
  %655 = vmatprep.subr.bf16.mxu0 0
  %656 = vmatpush1.bf16.msra.mxu0 0
  %657 = vmatprep.subr.bf16.mxu0 0
  %658 = vmatpush1.bf16.msra.mxu0 0
  %659 = vmatprep.mubr.bf16.mxu0 0
  %660 = vmatmul.mubr.bf16.gmra.mrb[0].mxu0 %v547
  %v661 = vpop.f32.mrb[0].mxu0
  %v662 = vadd.f32 0.0, %v661
  %v663 = vpop.f32.mrb[0].mxu0
  %v664 = vpop.f32.mrb[0].mxu0
  %v665 = vadd.f32 0.0, %v664
  %v666 = vpop.f32.mrb[0].mxu0
  %667 = vmatprep.mubr.bf16.mxu0 0
  %668 = vmatmul.mubr.bf16.gmra.mrb[0].mxu0 %v548
  %v669 = vpop.f32.mrb[0].mxu0
  %v670 = vadd.f32 0.0, %v669
  %v671 = vpop.f32.mrb[0].mxu0
  %v672 = vpop.f32.mrb[0].mxu0
  %v673 = vadd.f32 0.0, %v672
  %v674 = vpop.f32.mrb[0].mxu0
  %675 = vmatprep.mubr.bf16.mxu0 0
  %676 = vmatmul.mubr.bf16.gmra.mrb[0].mxu0 %v549
  %v677 = vpop.f32.mrb[0].mxu0
  %v678 = vadd.f32 0.0, %v677
  %v679 = vpop.f32.mrb[0].mxu0
  %v680 = vpop.f32.mrb[0].mxu0
  %v681 = vadd.f32 0.0, %v680
  %v682 = vpop.f32.mrb[0].mxu0
  %683 = vmatprep.mubr.bf16.mxu0 0
  %684 = vmatmul.mubr.bf16.gmra.mrb[0].mxu0 %v550
  %v685 = vpop.f32.mrb[0].mxu0
  %v686 = vadd.f32 0.0, %v685
  %v687 = vpop.f32.mrb[0].mxu0
  %v688 = vpop.f32.mrb[0].mxu0
  %v689 = vadd.f32 0.0, %v688
  %v690 = vpop.f32.mrb[0].mxu0
  %691 = vmatprep.mubr.bf16.mxu0 0
  %692 = vmatmul.mubr.bf16.gmra.mrb[0].mxu0 %v551
  %v693 = vpop.f32.mrb[0].mxu0
  %v694 = vadd.f32 0.0, %v693
  %v695 = vpop.f32.mrb[0].mxu0
  %v696 = vpop.f32.mrb[0].mxu0
  %v697 = vadd.f32 0.0, %v696
  %v698 = vpop.f32.mrb[0].mxu0
  %699 = vmatprep.mubr.bf16.mxu0 0
  %700 = vmatmul.mubr.bf16.gmra.mrb[0].mxu0 %v552
  %v701 = vpop.f32.mrb[0].mxu0
  %v702 = vadd.f32 0.0, %v701
  %v703 = vpop.f32.mrb[0].mxu0
  %v704 = vpop.f32.mrb[0].mxu0
  %v705 = vadd.f32 0.0, %v704
  %v706 = vpop.f32.mrb[0].mxu0
  %707 = vmatprep.mubr.bf16.mxu0 0
  %708 = vmatmul.mubr.bf16.gmra.mrb[0].mxu0 %v553
  %v709 = vpop.f32.mrb[0].mxu0
  %v710 = vadd.f32 0.0, %v709
  %v711 = vpop.f32.mrb[0].mxu0
  %v712 = vpop.f32.mrb[0].mxu0
  %v713 = vadd.f32 0.0, %v712
  %v714 = vpop.f32.mrb[0].mxu0
  %715 = vmatprep.mubr.bf16.mxu0 0
  %716 = vmatmul.mubr.bf16.gmra.mrb[0].mxu0 %v554
  %v717 = vpop.f32.mrb[0].mxu0
  %v718 = vadd.f32 0.0, %v717
  %v719 = vpop.f32.mrb[0].mxu0
  %v720 = vpop.f32.mrb[0].mxu0
  %v721 = vadd.f32 0.0, %v720
  %v722 = vpop.f32.mrb[0].mxu0
  %723 = vmatprep.mubr.bf16.mxu0 0
  %724 = vmatmul.mubr.bf16.gmra.mrb[0].mxu0 %v555
  %v725 = vpop.f32.mrb[0].mxu0
  %v726 = vadd.f32 0.0, %v725
  %v727 = vpop.f32.mrb[0].mxu0
  %v728 = vpop.f32.mrb[0].mxu0
  %v729 = vadd.f32 0.0, %v728
  %v730 = vpop.f32.mrb[0].mxu0
  %731 = vmatprep.mubr.bf16.mxu0 0
  %732 = vmatmul.mubr.bf16.gmra.mrb[0].mxu0 %v556
  %v733 = vpop.f32.mrb[0].mxu0
  %v734 = vadd.f32 0.0, %v733
  %v735 = vpop.f32.mrb[0].mxu0
  %v736 = vpop.f32.mrb[0].mxu0
  %v737 = vadd.f32 0.0, %v736
  %v738 = vpop.f32.mrb[0].mxu0
  %739 = vmatprep.mubr.bf16.mxu0 0
  %740 = vmatmul.mubr.bf16.gmra.mrb[0].mxu0 %v557
  %v741 = vpop.f32.mrb[0].mxu0
  %v742 = vadd.f32 0.0, %v741
  %v743 = vpop.f32.mrb[0].mxu0
  %v744 = vpop.f32.mrb[0].mxu0
  %v745 = vadd.f32 0.0, %v744
  %v746 = vpop.f32.mrb[0].mxu0
  %747 = vmatprep.mubr.bf16.mxu0 0
  %748 = vmatmul.mubr.bf16.gmra.mrb[0].mxu0 %v558
  %v749 = vpop.f32.mrb[0].mxu0
  %v750 = vadd.f32 0.0, %v749
  %v751 = vpop.f32.mrb[0].mxu0
  %v752 = vpop.f32.mrb[0].mxu0
  %v753 = vadd.f32 0.0, %v752
  %v754 = vpop.f32.mrb[0].mxu0
  %755 = vmatprep.mubr.bf16.mxu0 0
  %756 = vmatmul.mubr.bf16.gmra.mrb[0].mxu0 %v559
  %v757 = vpop.f32.mrb[0].mxu0
  %v758 = vadd.f32 0.0, %v757
  %v759 = vpop.f32.mrb[0].mxu0
  %v760 = vpop.f32.mrb[0].mxu0
  %v761 = vadd.f32 0.0, %v760
  %v762 = vpop.f32.mrb[0].mxu0
  %763 = vmatprep.mubr.bf16.mxu0 0
  %764 = vmatmul.mubr.bf16.gmra.mrb[0].mxu0 %v560
  %v765 = vpop.f32.mrb[0].mxu0
  %v766 = vadd.f32 0.0, %v765
  %v767 = vpop.f32.mrb[0].mxu0
  %v768 = vpop.f32.mrb[0].mxu0
  %v769 = vadd.f32 0.0, %v768
  %v770 = vpop.f32.mrb[0].mxu0
  %771 = vmatprep.mubr.bf16.mxu0 0
  %772 = vmatmul.mubr.bf16.gmra.mrb[0].mxu0 %v561
  %v773 = vpop.f32.mrb[0].mxu0
  %v774 = vadd.f32 0.0, %v773
  %v775 = vpop.f32.mrb[0].mxu0
  %v776 = vpop.f32.mrb[0].mxu0
  %v777 = vadd.f32 0.0, %v776
  %v778 = vpop.f32.mrb[0].mxu0
  %779 = vmatprep.mubr.bf16.mxu0 0
  %780 = vmatmul.mubr.bf16.gmra.mrb[0].mxu0 %v562
  %v781 = vpop.f32.mrb[0].mxu0
  %v782 = vadd.f32 0.0, %v781
  %v783 = vpop.f32.mrb[0].mxu0
  %v784 = vpop.f32.mrb[0].mxu0
  %v785 = vadd.f32 0.0, %v784
  %v786 = vpop.f32.mrb[0].mxu0
  %787 = vdwg.mxu0
  %v788 = vpack.c.bf16 %v665, %v662
  %v789 = vpack.c.bf16 %v673, %v670
  %v790 = vpack.c.bf16 %v681, %v678
  %v791 = vpack.c.bf16 %v689, %v686
  %v792 = vpack.c.bf16 %v697, %v694
  %v793 = vpack.c.bf16 %v705, %v702
  %v794 = vpack.c.bf16 %v713, %v710
  %v795 = vpack.c.bf16 %v721, %v718
  %v796 = vpack.c.bf16 %v729, %v726
  %v797 = vpack.c.bf16 %v737, %v734
  %v798 = vpack.c.bf16 %v745, %v742
  %v799 = vpack.c.bf16 %v753, %v750
  %v800 = vpack.c.bf16 %v761, %v758
  %v801 = vpack.c.bf16 %v769, %v766
  %v802 = vpack.c.bf16 %v777, %v774
  %v803 = vpack.c.bf16 %v785, %v782
  %v804 = vld [vmem:[%s4] sm:$0x1]
  %v806 = vlaneseq
  %v807 = vshrl.u32 %v806, 7
  %v808 = vsub.s32 0, %v807
  %v809 = vrot.slane %v804, %v808
  %811 = vmatprep.subr.bf16.mxu0 0
  %812 = vmatpush1.bf16.msra.mxu0 %v788
  %813 = vmatprep.subr.bf16.mxu0 0
  %814 = vmatpush1.bf16.msra.mxu0 %v789
  %815 = vmatprep.subr.bf16.mxu0 0
  %816 = vmatpush1.bf16.msra.mxu0 %v790
  %817 = vmatprep.subr.bf16.mxu0 0
  %818 = vmatpush1.bf16.msra.mxu0 %v791
  %819 = vmatprep.subr.bf16.mxu0 0
  %820 = vmatpush1.bf16.msra.mxu0 %v792
  %821 = vmatprep.subr.bf16.mxu0 0
  %822 = vmatpush1.bf16.msra.mxu0 %v793
  %823 = vmatprep.subr.bf16.mxu0 0
  %824 = vmatpush1.bf16.msra.mxu0 %v794
  %825 = vmatprep.subr.bf16.mxu0 0
  %826 = vmatpush1.bf16.msra.mxu0 %v795
  %827 = vmatprep.subr.bf16.mxu0 0
  %828 = vmatpush1.bf16.msra.mxu0 %v796
  %829 = vmatprep.subr.bf16.mxu0 0
  %830 = vmatpush1.bf16.msra.mxu0 %v797
  %831 = vmatprep.subr.bf16.mxu0 0
  %832 = vmatpush1.bf16.msra.mxu0 %v798
  %833 = vmatprep.subr.bf16.mxu0 0
  %834 = vmatpush1.bf16.msra.mxu0 %v799
  %835 = vmatprep.subr.bf16.mxu0 0
  %836 = vmatpush1.bf16.msra.mxu0 %v800
  %837 = vmatprep.subr.bf16.mxu0 0
  %838 = vmatpush1.bf16.msra.mxu0 %v801
  %839 = vmatprep.subr.bf16.mxu0 0
  %840 = vmatpush1.bf16.msra.mxu0 %v802
  %841 = vmatprep.subr.bf16.mxu0 0
  %842 = vmatpush1.bf16.msra.mxu0 %v803
  %843 = vmatprep.mubr.bf16.mxu0 %v195
  %844 = vmatmul.mubr.bf16.gmra.mrb[0].mxu0 %v194
  %v845 = vpop.f32.mrb[0].mxu0
  %v846 = vadd.f32 %v809, %v845
  %v847 = vpop.f32.mrb[0].mxu0
  %v848 = vpop.f32.mrb[0].mxu0
  %v849 = vadd.f32 %v809, %v848
  %v850 = vpop.f32.mrb[0].mxu0
  %851 = vmatprep.mubr.bf16.mxu0 %v197
  %852 = vmatmul.mubr.bf16.gmra.mrb[0].mxu0 %v196
  %v853 = vpop.f32.mrb[0].mxu0
  %v854 = vadd.f32 %v809, %v853
  %v855 = vpop.f32.mrb[0].mxu0
  %v856 = vpop.f32.mrb[0].mxu0
  %v857 = vadd.f32 %v809, %v856
  %v858 = vpop.f32.mrb[0].mxu0
  %859 = vmatprep.mubr.bf16.mxu0 %v199
  %860 = vmatmul.mubr.bf16.gmra.mrb[0].mxu0 %v198
  %v861 = vpop.f32.mrb[0].mxu0
  %v862 = vadd.f32 %v809, %v861
  %v863 = vpop.f32.mrb[0].mxu0
  %v864 = vpop.f32.mrb[0].mxu0
  %v865 = vadd.f32 %v809, %v864
  %v866 = vpop.f32.mrb[0].mxu0
  %867 = vmatprep.mubr.bf16.mxu0 %v201
  %868 = vmatmul.mubr.bf16.gmra.mrb[0].mxu0 %v200
  %v869 = vpop.f32.mrb[0].mxu0
  %v870 = vadd.f32 %v809, %v869
  %v871 = vpop.f32.mrb[0].mxu0
  %v872 = vpop.f32.mrb[0].mxu0
  %v873 = vadd.f32 %v809, %v872
  %v874 = vpop.f32.mrb[0].mxu0
  %875 = vmatprep.mubr.bf16.mxu0 %v203
  %876 = vmatmul.mubr.bf16.gmra.mrb[0].mxu0 %v202
  %v877 = vpop.f32.mrb[0].mxu0
  %v878 = vadd.f32 %v809, %v877
  %v879 = vpop.f32.mrb[0].mxu0
  %v880 = vpop.f32.mrb[0].mxu0
  %v881 = vadd.f32 %v809, %v880
  %v882 = vpop.f32.mrb[0].mxu0
  %883 = vmatprep.mubr.bf16.mxu0 %v205
  %884 = vmatmul.mubr.bf16.gmra.mrb[0].mxu0 %v204
  %v885 = vpop.f32.mrb[0].mxu0
  %v886 = vadd.f32 %v809, %v885
  %v887 = vpop.f32.mrb[0].mxu0
  %v888 = vpop.f32.mrb[0].mxu0
  %v889 = vadd.f32 %v809, %v888
  %v890 = vpop.f32.mrb[0].mxu0
  %891 = vmatprep.mubr.bf16.mxu0 %v207
  %892 = vmatmul.mubr.bf16.gmra.mrb[0].mxu0 %v206
  %v893 = vpop.f32.mrb[0].mxu0
  %v894 = vadd.f32 %v809, %v893
  %v895 = vpop.f32.mrb[0].mxu0
  %v896 = vpop.f32.mrb[0].mxu0
  %v897 = vadd.f32 %v809, %v896
  %v898 = vpop.f32.mrb[0].mxu0
  %899 = vmatprep.mubr.bf16.mxu0 %v209
  %900 = vmatmul.mubr.bf16.gmra.mrb[0].mxu0 %v208
  %v901 = vpop.f32.mrb[0].mxu0
  %v902 = vadd.f32 %v809, %v901
  %v903 = vpop.f32.mrb[0].mxu0
  %v904 = vpop.f32.mrb[0].mxu0
  %v905 = vadd.f32 %v809, %v904
  %v906 = vpop.f32.mrb[0].mxu0
  %907 = vmatprep.mubr.bf16.mxu0 %v211
  %908 = vmatmul.mubr.bf16.gmra.mrb[0].mxu0 %v210
  %v909 = vpop.f32.mrb[0].mxu0
  %v910 = vadd.f32 %v809, %v909
  %v911 = vpop.f32.mrb[0].mxu0
  %v912 = vpop.f32.mrb[0].mxu0
  %v913 = vadd.f32 %v809, %v912
  %v914 = vpop.f32.mrb[0].mxu0
  %915 = vmatprep.mubr.bf16.mxu0 %v213
  %916 = vmatmul.mubr.bf16.gmra.mrb[0].mxu0 %v212
  %v917 = vpop.f32.mrb[0].mxu0
  %v918 = vadd.f32 %v809, %v917
  %v919 = vpop.f32.mrb[0].mxu0
  %v920 = vpop.f32.mrb[0].mxu0
  %v921 = vadd.f32 %v809, %v920
  %v922 = vpop.f32.mrb[0].mxu0
  %923 = vmatprep.mubr.bf16.mxu0 %v215
  %924 = vmatmul.mubr.bf16.gmra.mrb[0].mxu0 %v214
  %v925 = vpop.f32.mrb[0].mxu0
  %v926 = vadd.f32 %v809, %v925
  %v927 = vpop.f32.mrb[0].mxu0
  %v928 = vpop.f32.mrb[0].mxu0
  %v929 = vadd.f32 %v809, %v928
  %v930 = vpop.f32.mrb[0].mxu0
  %931 = vmatprep.mubr.bf16.mxu0 %v217
  %932 = vmatmul.mubr.bf16.gmra.mrb[0].mxu0 %v216
  %v933 = vpop.f32.mrb[0].mxu0
  %v934 = vadd.f32 %v809, %v933
  %v935 = vpop.f32.mrb[0].mxu0
  %v936 = vpop.f32.mrb[0].mxu0
  %v937 = vadd.f32 %v809, %v936
  %v938 = vpop.f32.mrb[0].mxu0
  %939 = vmatprep.mubr.bf16.mxu0 %v219
  %940 = vmatmul.mubr.bf16.gmra.mrb[0].mxu0 %v218
  %v941 = vpop.f32.mrb[0].mxu0
  %v942 = vadd.f32 %v809, %v941
  %v943 = vpop.f32.mrb[0].mxu0
  %v944 = vpop.f32.mrb[0].mxu0
  %v945 = vadd.f32 %v809, %v944
  %v946 = vpop.f32.mrb[0].mxu0
  %947 = vmatprep.mubr.bf16.mxu0 %v221
  %948 = vmatmul.mubr.bf16.gmra.mrb[0].mxu0 %v220
  %v949 = vpop.f32.mrb[0].mxu0
  %v950 = vadd.f32 %v809, %v949
  %v951 = vpop.f32.mrb[0].mxu0
  %v952 = vpop.f32.mrb[0].mxu0
  %v953 = vadd.f32 %v809, %v952
  %v954 = vpop.f32.mrb[0].mxu0
  %955 = vmatprep.mubr.bf16.mxu0 %v223
  %956 = vmatmul.mubr.bf16.gmra.mrb[0].mxu0 %v222
  %v957 = vpop.f32.mrb[0].mxu0
  %v958 = vadd.f32 %v809, %v957
  %v959 = vpop.f32.mrb[0].mxu0
  %v960 = vpop.f32.mrb[0].mxu0
  %v961 = vadd.f32 %v809, %v960
  %v962 = vpop.f32.mrb[0].mxu0
  %963 = vmatprep.mubr.bf16.mxu0 %v225
  %964 = vmatmul.mubr.bf16.gmra.mrb[0].mxu0 %v224
  %v965 = vpop.f32.mrb[0].mxu0
  %v966 = vadd.f32 %v809, %v965
  %v967 = vpop.f32.mrb[0].mxu0
  %v968 = vpop.f32.mrb[0].mxu0
  %v969 = vadd.f32 %v809, %v968
  %v970 = vpop.f32.mrb[0].mxu0
  %971 = vdwg.mxu0
  %v972 = vmax.f32 %v846, 0.0
  %v973 = vmax.f32 %v849, 0.0
  %v974 = vmax.f32 %v854, 0.0
  %v975 = vmax.f32 %v857, 0.0
  %v976 = vmax.f32 %v862, 0.0
  %v977 = vmax.f32 %v865, 0.0
  %v978 = vmax.f32 %v870, 0.0
  %v979 = vmax.f32 %v873, 0.0
  %v980 = vmax.f32 %v878, 0.0
  %v981 = vmax.f32 %v881, 0.0
  %v982 = vmax.f32 %v886, 0.0
  %v983 = vmax.f32 %v889, 0.0
  %v984 = vmax.f32 %v894, 0.0
  %v985 = vmax.f32 %v897, 0.0
  %v986 = vmax.f32 %v902, 0.0
  %v987 = vmax.f32 %v905, 0.0
  %v988 = vmax.f32 %v910, 0.0
  %v989 = vmax.f32 %v913, 0.0
  %v990 = vmax.f32 %v918, 0.0
  %v991 = vmax.f32 %v921, 0.0
  %v992 = vmax.f32 %v926, 0.0
  %v993 = vmax.f32 %v929, 0.0
  %v994 = vmax.f32 %v934, 0.0
  %v995 = vmax.f32 %v937, 0.0
  %v996 = vmax.f32 %v942, 0.0
  %v997 = vmax.f32 %v945, 0.0
  %v998 = vmax.f32 %v950, 0.0
  %v999 = vmax.f32 %v953, 0.0
  %v1000 = vmax.f32 %v958, 0.0
  %v1001 = vmax.f32 %v961, 0.0
  %v1002 = vmax.f32 %v966, 0.0
  %v1003 = vmax.f32 %v969, 0.0
  %v1004 = vpack.c.bf16 %v973, %v972
  %v1005 = vpack.c.bf16 %v975, %v974
  %v1006 = vpack.c.bf16 %v977, %v976
  %v1007 = vpack.c.bf16 %v979, %v978
  %v1008 = vpack.c.bf16 %v981, %v980
  %v1009 = vpack.c.bf16 %v983, %v982
  %v1010 = vpack.c.bf16 %v985, %v984
  %v1011 = vpack.c.bf16 %v987, %v986
  %v1012 = vpack.c.bf16 %v989, %v988
  %v1013 = vpack.c.bf16 %v991, %v990
  %v1014 = vpack.c.bf16 %v993, %v992
  %v1015 = vpack.c.bf16 %v995, %v994
  %v1016 = vpack.c.bf16 %v997, %v996
  %v1017 = vpack.c.bf16 %v999, %v998
  %v1018 = vpack.c.bf16 %v1001, %v1000
  %v1019 = vpack.c.bf16 %v1003, %v1002
  %v1020 = vld [vmem:[%s5] sm:$0xf]
  %v1021 = vld [vmem:[%s5 + $0x4] sm:$0xf]
  %v1022 = vld [vmem:[%s5 + $0x8] sm:$0xf]
  %v1023 = vld [vmem:[%s5 + $0xc] sm:$0xf]
  %v1024 = vld [vmem:[%s5 + $0x10] sm:$0xf]
  %v1025 = vld [vmem:[%s5 + $0x14] sm:$0xf]
  %v1026 = vld [vmem:[%s5 + $0x18] sm:$0xf]
  %v1027 = vld [vmem:[%s5 + $0x1c] sm:$0xf]
  %v1028 = vld [vmem:[%s5 + $0x20] sm:$0xf]
  %v1029 = vld [vmem:[%s5 + $0x24] sm:$0xf]
  %v1030 = vld [vmem:[%s5 + $0x28] sm:$0xf]
  %v1031 = vld [vmem:[%s5 + $0x2c] sm:$0xf]
  %v1032 = vld [vmem:[%s5 + $0x30] sm:$0xf]
  %v1033 = vld [vmem:[%s5 + $0x34] sm:$0xf]
  %v1034 = vld [vmem:[%s5 + $0x38] sm:$0xf]
  %v1035 = vld [vmem:[%s5 + $0x3c] sm:$0xf]
  %v1052 = vunpack.c.l.b16 %v1020
  %v1053 = vunpack.c.l.b16 %v1021
  %v1054 = vunpack.c.l.b16 %v1022
  %v1055 = vunpack.c.l.b16 %v1023
  %v1056 = vunpack.c.l.b16 %v1024
  %v1057 = vunpack.c.l.b16 %v1025
  %v1058 = vunpack.c.l.b16 %v1026
  %v1059 = vunpack.c.l.b16 %v1027
  %v1060 = vunpack.c.l.b16 %v1028
  %v1061 = vunpack.c.l.b16 %v1029
  %v1062 = vunpack.c.l.b16 %v1030
  %v1063 = vunpack.c.l.b16 %v1031
  %v1064 = vunpack.c.l.b16 %v1032
  %v1065 = vunpack.c.l.b16 %v1033
  %v1066 = vunpack.c.l.b16 %v1034
  %v1067 = vunpack.c.l.b16 %v1035
  %v1068 = vpack.c.b16 %v1053, %v1052
  %v1069 = vpack.c.b16 %v1055, %v1054
  %v1070 = vpack.c.b16 %v1057, %v1056
  %v1071 = vpack.c.b16 %v1059, %v1058
  %v1072 = vpack.c.b16 %v1061, %v1060
  %v1073 = vpack.c.b16 %v1063, %v1062
  %v1074 = vpack.c.b16 %v1065, %v1064
  %v1075 = vpack.c.b16 %v1067, %v1066
  %1084 = vmatprep.subr.bf16.mxu0 0
  %1085 = vmatpush1.bf16.msra.mxu0 %v1068
  %1086 = vmatprep.subr.bf16.mxu0 0
  %1087 = vmatpush1.bf16.msra.mxu0 %v1069
  %1088 = vmatprep.subr.bf16.mxu0 0
  %1089 = vmatpush1.bf16.msra.mxu0 %v1070
  %1090 = vmatprep.subr.bf16.mxu0 0
  %1091 = vmatpush1.bf16.msra.mxu0 %v1071
  %1092 = vmatprep.subr.bf16.mxu0 0
  %1093 = vmatpush1.bf16.msra.mxu0 %v1072
  %1094 = vmatprep.subr.bf16.mxu0 0
  %1095 = vmatpush1.bf16.msra.mxu0 %v1073
  %1096 = vmatprep.subr.bf16.mxu0 0
  %1097 = vmatpush1.bf16.msra.mxu0 %v1074
  %1098 = vmatprep.subr.bf16.mxu0 0
  %1099 = vmatpush1.bf16.msra.mxu0 %v1075
  %1100 = vmatprep.subr.bf16.mxu0 0
  %1101 = vmatpush1.bf16.msra.mxu0 0
  %1102 = vmatprep.subr.bf16.mxu0 0
  %1103 = vmatpush1.bf16.msra.mxu0 0
  %1104 = vmatprep.subr.bf16.mxu0 0
  %1105 = vmatpush1.bf16.msra.mxu0 0
  %1106 = vmatprep.subr.bf16.mxu0 0
  %1107 = vmatpush1.bf16.msra.mxu0 0
  %1108 = vmatprep.subr.bf16.mxu0 0
  %1109 = vmatpush1.bf16.msra.mxu0 0
  %1110 = vmatprep.subr.bf16.mxu0 0
  %1111 = vmatpush1.bf16.msra.mxu0 0
  %1112 = vmatprep.subr.bf16.mxu0 0
  %1113 = vmatpush1.bf16.msra.mxu0 0
  %1114 = vmatprep.subr.bf16.mxu0 0
  %1115 = vmatpush1.bf16.msra.mxu0 0
  %1116 = vmatprep.mubr.bf16.mxu0 0
  %1117 = vmatmul.mubr.bf16.gmra.mrb[0].mxu0 %v1004
  %v1118 = vpop.f32.mrb[0].mxu0
  %v1119 = vadd.f32 0.0, %v1118
  %v1120 = vpop.f32.mrb[0].mxu0
  %v1121 = vpop.f32.mrb[0].mxu0
  %v1122 = vadd.f32 0.0, %v1121
  %v1123 = vpop.f32.mrb[0].mxu0
  %1124 = vmatprep.mubr.bf16.mxu0 0
  %1125 = vmatmul.mubr.bf16.gmra.mrb[0].mxu0 %v1005
  %v1126 = vpop.f32.mrb[0].mxu0
  %v1127 = vadd.f32 0.0, %v1126
  %v1128 = vpop.f32.mrb[0].mxu0
  %v1129 = vpop.f32.mrb[0].mxu0
  %v1130 = vadd.f32 0.0, %v1129
  %v1131 = vpop.f32.mrb[0].mxu0
  %1132 = vmatprep.mubr.bf16.mxu0 0
  %1133 = vmatmul.mubr.bf16.gmra.mrb[0].mxu0 %v1006
  %v1134 = vpop.f32.mrb[0].mxu0
  %v1135 = vadd.f32 0.0, %v1134
  %v1136 = vpop.f32.mrb[0].mxu0
  %v1137 = vpop.f32.mrb[0].mxu0
  %v1138 = vadd.f32 0.0, %v1137
  %v1139 = vpop.f32.mrb[0].mxu0
  %1140 = vmatprep.mubr.bf16.mxu0 0
  %1141 = vmatmul.mubr.bf16.gmra.mrb[0].mxu0 %v1007
  %v1142 = vpop.f32.mrb[0].mxu0
  %v1143 = vadd.f32 0.0, %v1142
  %v1144 = vpop.f32.mrb[0].mxu0
  %v1145 = vpop.f32.mrb[0].mxu0
  %v1146 = vadd.f32 0.0, %v1145
  %v1147 = vpop.f32.mrb[0].mxu0
  %1148 = vmatprep.mubr.bf16.mxu0 0
  %1149 = vmatmul.mubr.bf16.gmra.mrb[0].mxu0 %v1008
  %v1150 = vpop.f32.mrb[0].mxu0
  %v1151 = vadd.f32 0.0, %v1150
  %v1152 = vpop.f32.mrb[0].mxu0
  %v1153 = vpop.f32.mrb[0].mxu0
  %v1154 = vadd.f32 0.0, %v1153
  %v1155 = vpop.f32.mrb[0].mxu0
  %1156 = vmatprep.mubr.bf16.mxu0 0
  %1157 = vmatmul.mubr.bf16.gmra.mrb[0].mxu0 %v1009
  %v1158 = vpop.f32.mrb[0].mxu0
  %v1159 = vadd.f32 0.0, %v1158
  %v1160 = vpop.f32.mrb[0].mxu0
  %v1161 = vpop.f32.mrb[0].mxu0
  %v1162 = vadd.f32 0.0, %v1161
  %v1163 = vpop.f32.mrb[0].mxu0
  %1164 = vmatprep.mubr.bf16.mxu0 0
  %1165 = vmatmul.mubr.bf16.gmra.mrb[0].mxu0 %v1010
  %v1166 = vpop.f32.mrb[0].mxu0
  %v1167 = vadd.f32 0.0, %v1166
  %v1168 = vpop.f32.mrb[0].mxu0
  %v1169 = vpop.f32.mrb[0].mxu0
  %v1170 = vadd.f32 0.0, %v1169
  %v1171 = vpop.f32.mrb[0].mxu0
  %1172 = vmatprep.mubr.bf16.mxu0 0
  %1173 = vmatmul.mubr.bf16.gmra.mrb[0].mxu0 %v1011
  %v1174 = vpop.f32.mrb[0].mxu0
  %v1175 = vadd.f32 0.0, %v1174
  %v1176 = vpop.f32.mrb[0].mxu0
  %v1177 = vpop.f32.mrb[0].mxu0
  %v1178 = vadd.f32 0.0, %v1177
  %v1179 = vpop.f32.mrb[0].mxu0
  %1180 = vmatprep.mubr.bf16.mxu0 0
  %1181 = vmatmul.mubr.bf16.gmra.mrb[0].mxu0 %v1012
  %v1182 = vpop.f32.mrb[0].mxu0
  %v1183 = vadd.f32 0.0, %v1182
  %v1184 = vpop.f32.mrb[0].mxu0
  %v1185 = vpop.f32.mrb[0].mxu0
  %v1186 = vadd.f32 0.0, %v1185
  %v1187 = vpop.f32.mrb[0].mxu0
  %1188 = vmatprep.mubr.bf16.mxu0 0
  %1189 = vmatmul.mubr.bf16.gmra.mrb[0].mxu0 %v1013
  %v1190 = vpop.f32.mrb[0].mxu0
  %v1191 = vadd.f32 0.0, %v1190
  %v1192 = vpop.f32.mrb[0].mxu0
  %v1193 = vpop.f32.mrb[0].mxu0
  %v1194 = vadd.f32 0.0, %v1193
  %v1195 = vpop.f32.mrb[0].mxu0
  %1196 = vmatprep.mubr.bf16.mxu0 0
  %1197 = vmatmul.mubr.bf16.gmra.mrb[0].mxu0 %v1014
  %v1198 = vpop.f32.mrb[0].mxu0
  %v1199 = vadd.f32 0.0, %v1198
  %v1200 = vpop.f32.mrb[0].mxu0
  %v1201 = vpop.f32.mrb[0].mxu0
  %v1202 = vadd.f32 0.0, %v1201
  %v1203 = vpop.f32.mrb[0].mxu0
  %1204 = vmatprep.mubr.bf16.mxu0 0
  %1205 = vmatmul.mubr.bf16.gmra.mrb[0].mxu0 %v1015
  %v1206 = vpop.f32.mrb[0].mxu0
  %v1207 = vadd.f32 0.0, %v1206
  %v1208 = vpop.f32.mrb[0].mxu0
  %v1209 = vpop.f32.mrb[0].mxu0
  %v1210 = vadd.f32 0.0, %v1209
  %v1211 = vpop.f32.mrb[0].mxu0
  %1212 = vmatprep.mubr.bf16.mxu0 0
  %1213 = vmatmul.mubr.bf16.gmra.mrb[0].mxu0 %v1016
  %v1214 = vpop.f32.mrb[0].mxu0
  %v1215 = vadd.f32 0.0, %v1214
  %v1216 = vpop.f32.mrb[0].mxu0
  %v1217 = vpop.f32.mrb[0].mxu0
  %v1218 = vadd.f32 0.0, %v1217
  %v1219 = vpop.f32.mrb[0].mxu0
  %1220 = vmatprep.mubr.bf16.mxu0 0
  %1221 = vmatmul.mubr.bf16.gmra.mrb[0].mxu0 %v1017
  %v1222 = vpop.f32.mrb[0].mxu0
  %v1223 = vadd.f32 0.0, %v1222
  %v1224 = vpop.f32.mrb[0].mxu0
  %v1225 = vpop.f32.mrb[0].mxu0
  %v1226 = vadd.f32 0.0, %v1225
  %v1227 = vpop.f32.mrb[0].mxu0
  %1228 = vmatprep.mubr.bf16.mxu0 0
  %1229 = vmatmul.mubr.bf16.gmra.mrb[0].mxu0 %v1018
  %v1230 = vpop.f32.mrb[0].mxu0
  %v1231 = vadd.f32 0.0, %v1230
  %v1232 = vpop.f32.mrb[0].mxu0
  %v1233 = vpop.f32.mrb[0].mxu0
  %v1234 = vadd.f32 0.0, %v1233
  %v1235 = vpop.f32.mrb[0].mxu0
  %1236 = vmatprep.mubr.bf16.mxu0 0
  %1237 = vmatmul.mubr.bf16.gmra.mrb[0].mxu0 %v1019
  %v1238 = vpop.f32.mrb[0].mxu0
  %v1239 = vadd.f32 0.0, %v1238
  %v1240 = vpop.f32.mrb[0].mxu0
  %v1241 = vpop.f32.mrb[0].mxu0
  %v1242 = vadd.f32 0.0, %v1241
  %v1243 = vpop.f32.mrb[0].mxu0
  %1244 = vdwg.mxu0
  %v1245 = vpack.c.bf16 %v1122, %v1119
  %v1246 = vpack.c.bf16 %v1130, %v1127
  %v1247 = vpack.c.bf16 %v1138, %v1135
  %v1248 = vpack.c.bf16 %v1146, %v1143
  %v1249 = vpack.c.bf16 %v1154, %v1151
  %v1250 = vpack.c.bf16 %v1162, %v1159
  %v1251 = vpack.c.bf16 %v1170, %v1167
  %v1252 = vpack.c.bf16 %v1178, %v1175
  %v1253 = vpack.c.bf16 %v1186, %v1183
  %v1254 = vpack.c.bf16 %v1194, %v1191
  %v1255 = vpack.c.bf16 %v1202, %v1199
  %v1256 = vpack.c.bf16 %v1210, %v1207
  %v1257 = vpack.c.bf16 %v1218, %v1215
  %v1258 = vpack.c.bf16 %v1226, %v1223
  %v1259 = vpack.c.bf16 %v1234, %v1231
  %v1260 = vpack.c.bf16 %v1242, %v1239
  %v1261 = vld [vmem:[%s6] sm:$0x1]
  %v1263 = vlaneseq
  %v1264 = vshrl.u32 %v1263, 7
  %v1265 = vsub.s32 0, %v1264
  %v1266 = vrot.slane %v1261, %v1265
  %1268 = vmatprep.subr.bf16.mxu0 0
  %1269 = vmatpush1.bf16.msra.mxu0 %v1245
  %1270 = vmatprep.subr.bf16.mxu0 0
  %1271 = vmatpush1.bf16.msra.mxu0 %v1246
  %1272 = vmatprep.subr.bf16.mxu0 0
  %1273 = vmatpush1.bf16.msra.mxu0 %v1247
  %1274 = vmatprep.subr.bf16.mxu0 0
  %1275 = vmatpush1.bf16.msra.mxu0 %v1248
  %1276 = vmatprep.subr.bf16.mxu0 0
  %1277 = vmatpush1.bf16.msra.mxu0 %v1249
  %1278 = vmatprep.subr.bf16.mxu0 0
  %1279 = vmatpush1.bf16.msra.mxu0 %v1250
  %1280 = vmatprep.subr.bf16.mxu0 0
  %1281 = vmatpush1.bf16.msra.mxu0 %v1251
  %1282 = vmatprep.subr.bf16.mxu0 0
  %1283 = vmatpush1.bf16.msra.mxu0 %v1252
  %1284 = vmatprep.subr.bf16.mxu0 0
  %1285 = vmatpush1.bf16.msra.mxu0 %v1253
  %1286 = vmatprep.subr.bf16.mxu0 0
  %1287 = vmatpush1.bf16.msra.mxu0 %v1254
  %1288 = vmatprep.subr.bf16.mxu0 0
  %1289 = vmatpush1.bf16.msra.mxu0 %v1255
  %1290 = vmatprep.subr.bf16.mxu0 0
  %1291 = vmatpush1.bf16.msra.mxu0 %v1256
  %1292 = vmatprep.subr.bf16.mxu0 0
  %1293 = vmatpush1.bf16.msra.mxu0 %v1257
  %1294 = vmatprep.subr.bf16.mxu0 0
  %1295 = vmatpush1.bf16.msra.mxu0 %v1258
  %1296 = vmatprep.subr.bf16.mxu0 0
  %1297 = vmatpush1.bf16.msra.mxu0 %v1259
  %1298 = vmatprep.subr.bf16.mxu0 0
  %1299 = vmatpush1.bf16.msra.mxu0 %v1260
  %1300 = vmatprep.mubr.bf16.mxu0 %v195
  %1301 = vmatmul.mubr.bf16.gmra.mrb[0].mxu0 %v194
  %v1302 = vpop.f32.mrb[0].mxu0
  %v1303 = vadd.f32 %v1266, %v1302
  %v1304 = vpop.f32.mrb[0].mxu0
  %v1305 = vpop.f32.mrb[0].mxu0
  %v1306 = vadd.f32 %v1266, %v1305
  %v1307 = vpop.f32.mrb[0].mxu0
  %1308 = vmatprep.mubr.bf16.mxu0 %v197
  %1309 = vmatmul.mubr.bf16.gmra.mrb[0].mxu0 %v196
  %v1310 = vpop.f32.mrb[0].mxu0
  %v1311 = vadd.f32 %v1266, %v1310
  %v1312 = vpop.f32.mrb[0].mxu0
  %v1313 = vpop.f32.mrb[0].mxu0
  %v1314 = vadd.f32 %v1266, %v1313
  %v1315 = vpop.f32.mrb[0].mxu0
  %1316 = vmatprep.mubr.bf16.mxu0 %v199
  %1317 = vmatmul.mubr.bf16.gmra.mrb[0].mxu0 %v198
  %v1318 = vpop.f32.mrb[0].mxu0
  %v1319 = vadd.f32 %v1266, %v1318
  %v1320 = vpop.f32.mrb[0].mxu0
  %v1321 = vpop.f32.mrb[0].mxu0
  %v1322 = vadd.f32 %v1266, %v1321
  %v1323 = vpop.f32.mrb[0].mxu0
  %1324 = vmatprep.mubr.bf16.mxu0 %v201
  %1325 = vmatmul.mubr.bf16.gmra.mrb[0].mxu0 %v200
  %v1326 = vpop.f32.mrb[0].mxu0
  %v1327 = vadd.f32 %v1266, %v1326
  %v1328 = vpop.f32.mrb[0].mxu0
  %v1329 = vpop.f32.mrb[0].mxu0
  %v1330 = vadd.f32 %v1266, %v1329
  %v1331 = vpop.f32.mrb[0].mxu0
  %1332 = vmatprep.mubr.bf16.mxu0 %v203
  %1333 = vmatmul.mubr.bf16.gmra.mrb[0].mxu0 %v202
  %v1334 = vpop.f32.mrb[0].mxu0
  %v1335 = vadd.f32 %v1266, %v1334
  %v1336 = vpop.f32.mrb[0].mxu0
  %v1337 = vpop.f32.mrb[0].mxu0
  %v1338 = vadd.f32 %v1266, %v1337
  %v1339 = vpop.f32.mrb[0].mxu0
  %1340 = vmatprep.mubr.bf16.mxu0 %v205
  %1341 = vmatmul.mubr.bf16.gmra.mrb[0].mxu0 %v204
  %v1342 = vpop.f32.mrb[0].mxu0
  %v1343 = vadd.f32 %v1266, %v1342
  %v1344 = vpop.f32.mrb[0].mxu0
  %v1345 = vpop.f32.mrb[0].mxu0
  %v1346 = vadd.f32 %v1266, %v1345
  %v1347 = vpop.f32.mrb[0].mxu0
  %1348 = vmatprep.mubr.bf16.mxu0 %v207
  %1349 = vmatmul.mubr.bf16.gmra.mrb[0].mxu0 %v206
  %v1350 = vpop.f32.mrb[0].mxu0
  %v1351 = vadd.f32 %v1266, %v1350
  %v1352 = vpop.f32.mrb[0].mxu0
  %v1353 = vpop.f32.mrb[0].mxu0
  %v1354 = vadd.f32 %v1266, %v1353
  %v1355 = vpop.f32.mrb[0].mxu0
  %1356 = vmatprep.mubr.bf16.mxu0 %v209
  %1357 = vmatmul.mubr.bf16.gmra.mrb[0].mxu0 %v208
  %v1358 = vpop.f32.mrb[0].mxu0
  %v1359 = vadd.f32 %v1266, %v1358
  %v1360 = vpop.f32.mrb[0].mxu0
  %v1361 = vpop.f32.mrb[0].mxu0
  %v1362 = vadd.f32 %v1266, %v1361
  %v1363 = vpop.f32.mrb[0].mxu0
  %1364 = vmatprep.mubr.bf16.mxu0 %v211
  %1365 = vmatmul.mubr.bf16.gmra.mrb[0].mxu0 %v210
  %v1366 = vpop.f32.mrb[0].mxu0
  %v1367 = vadd.f32 %v1266, %v1366
  %v1368 = vpop.f32.mrb[0].mxu0
  %v1369 = vpop.f32.mrb[0].mxu0
  %v1370 = vadd.f32 %v1266, %v1369
  %v1371 = vpop.f32.mrb[0].mxu0
  %1372 = vmatprep.mubr.bf16.mxu0 %v213
  %1373 = vmatmul.mubr.bf16.gmra.mrb[0].mxu0 %v212
  %v1374 = vpop.f32.mrb[0].mxu0
  %v1375 = vadd.f32 %v1266, %v1374
  %v1376 = vpop.f32.mrb[0].mxu0
  %v1377 = vpop.f32.mrb[0].mxu0
  %v1378 = vadd.f32 %v1266, %v1377
  %v1379 = vpop.f32.mrb[0].mxu0
  %1380 = vmatprep.mubr.bf16.mxu0 %v215
  %1381 = vmatmul.mubr.bf16.gmra.mrb[0].mxu0 %v214
  %v1382 = vpop.f32.mrb[0].mxu0
  %v1383 = vadd.f32 %v1266, %v1382
  %v1384 = vpop.f32.mrb[0].mxu0
  %v1385 = vpop.f32.mrb[0].mxu0
  %v1386 = vadd.f32 %v1266, %v1385
  %v1387 = vpop.f32.mrb[0].mxu0
  %1388 = vmatprep.mubr.bf16.mxu0 %v217
  %1389 = vmatmul.mubr.bf16.gmra.mrb[0].mxu0 %v216
  %v1390 = vpop.f32.mrb[0].mxu0
  %v1391 = vadd.f32 %v1266, %v1390
  %v1392 = vpop.f32.mrb[0].mxu0
  %v1393 = vpop.f32.mrb[0].mxu0
  %v1394 = vadd.f32 %v1266, %v1393
  %v1395 = vpop.f32.mrb[0].mxu0
  %1396 = vmatprep.mubr.bf16.mxu0 %v219
  %1397 = vmatmul.mubr.bf16.gmra.mrb[0].mxu0 %v218
  %v1398 = vpop.f32.mrb[0].mxu0
  %v1399 = vadd.f32 %v1266, %v1398
  %v1400 = vpop.f32.mrb[0].mxu0
  %v1401 = vpop.f32.mrb[0].mxu0
  %v1402 = vadd.f32 %v1266, %v1401
  %v1403 = vpop.f32.mrb[0].mxu0
  %1404 = vmatprep.mubr.bf16.mxu0 %v221
  %1405 = vmatmul.mubr.bf16.gmra.mrb[0].mxu0 %v220
  %v1406 = vpop.f32.mrb[0].mxu0
  %v1407 = vadd.f32 %v1266, %v1406
  %v1408 = vpop.f32.mrb[0].mxu0
  %v1409 = vpop.f32.mrb[0].mxu0
  %v1410 = vadd.f32 %v1266, %v1409
  %v1411 = vpop.f32.mrb[0].mxu0
  %1412 = vmatprep.mubr.bf16.mxu0 %v223
  %1413 = vmatmul.mubr.bf16.gmra.mrb[0].mxu0 %v222
  %v1414 = vpop.f32.mrb[0].mxu0
  %v1415 = vadd.f32 %v1266, %v1414
  %v1416 = vpop.f32.mrb[0].mxu0
  %v1417 = vpop.f32.mrb[0].mxu0
  %v1418 = vadd.f32 %v1266, %v1417
  %v1419 = vpop.f32.mrb[0].mxu0
  %1420 = vmatprep.mubr.bf16.mxu0 %v225
  %1421 = vmatmul.mubr.bf16.gmra.mrb[0].mxu0 %v224
  %v1422 = vpop.f32.mrb[0].mxu0
  %v1423 = vadd.f32 %v1266, %v1422
  %v1424 = vpop.f32.mrb[0].mxu0
  %v1425 = vpop.f32.mrb[0].mxu0
  %v1426 = vadd.f32 %v1266, %v1425
  %v1427 = vpop.f32.mrb[0].mxu0
  %1428 = vdwg.mxu0
  %1429 = vst [vmem:[%s7] sm:$0xff] %v1303
  %1430 = vst [vmem:[%s7 + $0x8] sm:$0xff] %v1306
  %1431 = vst [vmem:[%s7 + $0x10] sm:$0xff] %v1311
  %1432 = vst [vmem:[%s7 + $0x18] sm:$0xff] %v1314
  %1433 = vst [vmem:[%s7 + $0x20] sm:$0xff] %v1319
  %1434 = vst [vmem:[%s7 + $0x28] sm:$0xff] %v1322
  %1435 = vst [vmem:[%s7 + $0x30] sm:$0xff] %v1327
  %1436 = vst [vmem:[%s7 + $0x38] sm:$0xff] %v1330
  %1437 = vst [vmem:[%s7 + $0x40] sm:$0xff] %v1335
  %1438 = vst [vmem:[%s7 + $0x48] sm:$0xff] %v1338
  %1439 = vst [vmem:[%s7 + $0x50] sm:$0xff] %v1343
  %1440 = vst [vmem:[%s7 + $0x58] sm:$0xff] %v1346
  %1441 = vst [vmem:[%s7 + $0x60] sm:$0xff] %v1351
  %1442 = vst [vmem:[%s7 + $0x68] sm:$0xff] %v1354
  %1443 = vst [vmem:[%s7 + $0x70] sm:$0xff] %v1359
  %1444 = vst [vmem:[%s7 + $0x78] sm:$0xff] %v1362
  %1445 = vst [vmem:[%s7 + $0x80] sm:$0xff] %v1367
  %1446 = vst [vmem:[%s7 + $0x88] sm:$0xff] %v1370
  %1447 = vst [vmem:[%s7 + $0x90] sm:$0xff] %v1375
  %1448 = vst [vmem:[%s7 + $0x98] sm:$0xff] %v1378
  %1449 = vst [vmem:[%s7 + $0xa0] sm:$0xff] %v1383
  %1450 = vst [vmem:[%s7 + $0xa8] sm:$0xff] %v1386
  %1451 = vst [vmem:[%s7 + $0xb0] sm:$0xff] %v1391
  %1452 = vst [vmem:[%s7 + $0xb8] sm:$0xff] %v1394
  %1453 = vst [vmem:[%s7 + $0xc0] sm:$0xff] %v1399
  %1454 = vst [vmem:[%s7 + $0xc8] sm:$0xff] %v1402
  %1455 = vst [vmem:[%s7 + $0xd0] sm:$0xff] %v1407
  %1456 = vst [vmem:[%s7 + $0xd8] sm:$0xff] %v1410
  %1457 = vst [vmem:[%s7 + $0xe0] sm:$0xff] %v1415
  %1458 = vst [vmem:[%s7 + $0xe8] sm:$0xff] %v1418
  %1459 = vst [vmem:[%s7 + $0xf0] sm:$0xff] %v1423
  %1460 = vst [vmem:[%s7 + $0xf8] sm:$0xff] %v1426
  // Predicated region
  $region30: #{model_dropedge_forward.1} parent=0 // pred_check
    _
  $region31: #{model_dropedge_forward.1} parent=0 // pred_check_branch
    %1462 = sbr.rel (0) target = $region33
  $region32: #{model_dropedge_forward.1} parent=0 // pred_region
    _
  $region33: #{model_dropedge_forward.1} parent=0 // pred_fallthru
    _
  // Predicated region
  $region34: #{model_dropedge_forward.1} parent=0 // pred_check
    _
  $region35: #{model_dropedge_forward.1} parent=0 // pred_check_branch
    %1464 = sbr.rel (0) target = $region37
  $region36: #{model_dropedge_forward.1} parent=0 // pred_region
    _
  $region37: #{model_dropedge_forward.1} parent=0 // pred_fallthru
    _

</llo_original>
